<compile_context>
chip_gen: v5e
topology: v5e:2x2
jax: 0.10.0
libtpu: 0.0.40
codegen_flags: <defaults>
</compile_context>

<pallas_src>
from functools import partial

import numpy as np
import jax
import jax.numpy as jnp
from jax import lax
from jax.experimental import pallas as pl
from jax.experimental.pallas import tpu as pltpu


# ----------------------------------------------------------------------------
# Fused Pallas kernel
# ----------------------------------------------------------------------------
def _residual_block_up_kernel(
    xp_ref,     # (N*H, W*Cin)            packed input  rows=(n,h), lanes=(w,c)
    w1_ref,     # (3*W*Cin, 2*W2*Cout)    conv1 weights, upsample + vertical taps folded
    w2_ref,     # (K*W2*Cout, W2*Cout)    conv2 per-vertical-tap weights, stacked on K dim
    wsc_ref,    # (W*Cin, 2*W2*Cout)      shortcut: upsample + 1x1 conv folded
    tin1_ref,   # (W*Cin, Cin)            BN1 lane->channel reducer (1/count folded in)
    eg1_ref,    # (Cin, W*Cin)            BN1 channel->lane expander (gamma folded in)
    b1l_ref,    # (1, W*Cin)              BN1 beta, pre-expanded to lanes
    tin2_ref,   # (2*W2*Cout, Cout)       BN2 reducer (1/count folded in)
    eg2_ref,    # (Cout, 2*W2*Cout)       BN2 expander (gamma folded in)
    b2l_ref,    # (1, 2*W2*Cout)          BN2 beta, pre-expanded to lanes
    bias_ref,   # (1, 2*W2*Cout)          conv2 bias + shortcut bias, lane-expanded
    o_ref,      # (N*H, 2*W2*Cout)        packed output rows=(n,h), lanes=(parity,x,o)
    *, rows_per_image, eps):
    f32 = jnp.float32

    def mxu(a, w_ref):
        w = w_ref[...]
        return jnp.dot(a.astype(w.dtype), w, preferred_element_type=f32)

    def bn_relu(x, tin_ref, eg_ref, bl_ref):
        # single-pass batch statistics: [sum(x); sum(x*x)] reduced by one matmul
        s = jnp.concatenate(
            [jnp.sum(x, axis=0, keepdims=True),
             jnp.sum(x * x, axis=0, keepdims=True)], axis=0)            # (2, L)
        st = jnp.dot(s, tin_ref[...], preferred_element_type=f32)        # (2, C)
        mean = st[0:1, :]
        var = st[1:2, :] - mean * mean                                   # E[x^2]-mean^2
        rs = lax.rsqrt(var + eps)                                        # (1, C)
        coef = jnp.concatenate([rs, -mean * rs], axis=0)                 # (2, C)
        cl = jnp.dot(coef, eg_ref[...], preferred_element_type=f32)      # (2, L), gamma folded
        return jnp.maximum(x * cl[0:1, :] + cl[1:2, :] + bl_ref[...], 0.0)

    def shift_down(x):   # out[r] = x[r-1], zero at first row of each image
        rid = lax.broadcasted_iota(jnp.int32, x.shape, 0)
        return jnp.where(rid % rows_per_image == 0, 0.0,
                         pltpu.roll(x, shift=1, axis=0))

    def shift_up(x):     # out[r] = x[r+1], zero at last row of each image
        rid = lax.broadcasted_iota(jnp.int32, x.shape, 0)
        return jnp.where(rid % rows_per_image == rows_per_image - 1, 0.0,
                         pltpu.roll(x, shift=x.shape[0] - 1, axis=0))

    xp = xp_ref[...].astype(f32)                                          # (R, W*Cin)

    # ---- BN1 (batch stats) + ReLU -------------------------------------------------
    h = bn_relu(xp, tin1_ref, eg1_ref, b1l_ref)                           # (R, W*Cin)

    # ---- conv1 (KxK, same pad) with repeat+pixel_shuffle upsample folded in -------
    # vertical taps become row shifts of h; both output-row parities live in lanes.
    x1 = jnp.concatenate([shift_down(h), h, shift_up(h)], axis=1)         # (R, 3*W*Cin)
    c1 = mxu(x1, w1_ref)                                                  # (R, 2*W2*Cout)

    # ---- BN2 + ReLU ---------------------------------------------------------------
    a2 = bn_relu(c1, tin2_ref, eg2_ref, b2l_ref)                          # (R, 2*W2*Cout)

    # ---- conv2 (KxK, same pad) on the upsampled tensor, per output-row parity -----
    half = a2.shape[1] // 2
    a2_h0 = a2[:, :half]        # rows y = 2h
    a2_h1 = a2[:, half:]        # rows y = 2h+1
    p0 = mxu(jnp.concatenate([shift_down(a2_h1), a2], axis=1), w2_ref)    # (R, W2*Cout)
    p1 = mxu(jnp.concatenate([a2, shift_up(a2_h0)], axis=1), w2_ref)      # (R, W2*Cout)
    c2 = jnp.concatenate([p0, p1], axis=1)                                # (R, 2*W2*Cout)

    # ---- shortcut: upsample + 1x1 conv folded into one matmul from the raw input --
    sc = mxu(xp, wsc_ref)                                                 # (R, 2*W2*Cout)

    o_ref[...] = (c2 + sc + bias_ref[...]).astype(o_ref.dtype)            # dense store


# ----------------------------------------------------------------------------
# One-time parameter folding (weights -> stacked banded / folded matrices)
# ----------------------------------------------------------------------------
def preprocess_params(params, *, N, H, W, Cin, Cout, K, param_dtype=jnp.bfloat16):
    H2, W2 = 2 * H, 2 * W
    P = K // 2

    # horizontal tap shifts (zero padded): ptap[d, xi, xo] = 1 iff xi == xo + d - P
    ptap = np.zeros((K, W2, W2), np.float32)
    for d in range(K):
        for xo in range(W2):
            xi = xo + d - P
            if 0 <= xi < W2:
                ptap[d, xi, xo] = 1.0

    # repeat(1,4,1,1)+pixel_shuffle(2) column/channel shuffle, per output-row parity i:
    # u[n, 2h+i, 2w+j, c] = x[n, h, w, (4c+2i+j) % Cin]
    upc = np.zeros((2, W * Cin, W2 * Cin), np.float32)
    for i in range(2):
        for w in range(W):
            for j in range(2):
                for c in range(Cin):
                    src = (4 * c + 2 * i + j) % Cin
                    upc[i, w * Cin + src, (2 * w + j) * Cin + c] = 1.0

    w1 = np.asarray(params["w1"], np.float32)           # (K, K, Cin, Cout)   HWIO
    w2 = np.asarray(params["w2"], np.float32)           # (K, K, Cout, Cout)  HWIO
    wsc = np.asarray(params["w_sc"], np.float32)[0, 0]  # (Cin, Cout)

    # fold conv weights into banded per-vertical-tap lane matrices
    m1 = np.einsum("dxy,kdco->kxcyo", ptap, w1).reshape(K, W2 * Cin, W2 * Cout)
    m2 = np.einsum("dxy,kdco->kxcyo", ptap, w2).reshape(K, W2 * Cout, W2 * Cout)

    # conv1: fold the upsample (row parity + channel shuffle) into the weights.
    #   parity-0 output (y=2h)   = h[r-1]@upc1@m1[0] + h[r]@(upc0@m1[1] + upc1@m1[2])
    #   parity-1 output (y=2h+1) = h[r]@(upc0@m1[0] + upc1@m1[1]) + h[r+1]@upc0@m1[2]
    LA = W2 * Cout
    lin = W * Cin
    w1full = np.zeros((3 * lin, 2 * LA), np.float32)
    w1full[0 * lin:1 * lin, 0:LA] = upc[1] @ m1[0]
    w1full[1 * lin:2 * lin, 0:LA] = upc[0] @ m1[1] + upc[1] @ m1[2]
    w1full[1 * lin:2 * lin, LA:2 * LA] = upc[0] @ m1[0] + upc[1] @ m1[1]
    w1full[2 * lin:3 * lin, LA:2 * LA] = upc[0] @ m1[2]

    # conv2: stack vertical taps along the contraction dim (shared by both parities)
    m2stack = m2.reshape(K * W2 * Cout, W2 * Cout)

    # shortcut: upsample then 1x1 conv, folded into one lane matrix
    mscd = np.zeros((W2 * Cin, W2 * Cout), np.float32)
    for x in range(W2):
        mscd[x * Cin:(x + 1) * Cin, x * Cout:(x + 1) * Cout] = wsc
    msc = np.concatenate([upc[0] @ mscd, upc[1] @ mscd], axis=1)   # (W*Cin, 2*W2*Cout)

    # BN lane<->channel maps (reduction scaled by 1/count; gamma folded into expanders;
    # beta pre-expanded to lane vectors)
    cnt1 = float(N * H * W)
    cnt2 = float(N * H2 * W2)
    lout = 2 * W2 * Cout

    tin1 = np.zeros((lin, Cin), np.float32)
    eg1 = np.zeros((Cin, lin), np.float32)
    g1 = np.asarray(params["g1"], np.float32)
    for l in range(lin):
        tin1[l, l % Cin] = 1.0 / cnt1
        eg1[l % Cin, l] = g1[l % Cin]
    b1l = np.tile(np.asarray(params["be1"], np.float32), W)[None, :]

    tin2 = np.zeros((lout, Cout), np.float32)
    eg2 = np.zeros((Cout, lout), np.float32)
    g2 = np.asarray(params["g2"], np.float32)
    for l in range(lout):
        tin2[l, l % Cout] = 1.0 / cnt2
        eg2[l % Cout, l] = g2[l % Cout]
    b2l = np.tile(np.asarray(params["be2"], np.float32), 2 * W2)[None, :]

    bias_l = np.tile(np.asarray(params["b2"] + params["b_sc"], np.float32), 2 * W2)[None, :]

    return dict(
        w1full=jnp.asarray(w1full, param_dtype),
        m2stack=jnp.asarray(m2stack, param_dtype),
        msc=jnp.asarray(msc, param_dtype),
        tin1=jnp.asarray(tin1), eg1=jnp.asarray(eg1), b1l=jnp.asarray(b1l),
        tin2=jnp.asarray(tin2), eg2=jnp.asarray(eg2), b2l=jnp.asarray(b2l),
        bias=jnp.asarray(bias_l),
    )


# ----------------------------------------------------------------------------
# Forward wrapper: one pallas_call, one input repack, one output unpack
# ----------------------------------------------------------------------------
def residual_block_up_forward(x_nchw, pp, *, N, H, W, Cin, Cout, K, eps=1e-5):
    H2, W2 = 2 * H, 2 * W
    R = N * H
    lin = W * Cin
    lout = 2 * W2 * Cout

    # NCHW -> packed (N*H, W*Cin): rows=(n,h), lanes=(w,c)
    xp = jnp.transpose(x_nchw, (0, 2, 3, 1)).reshape(R, lin)

    kernel = partial(_residual_block_up_kernel, rows_per_image=H, eps=eps)

    operands = (xp, pp["w1full"], pp["m2stack"], pp["msc"],
                pp["tin1"], pp["eg1"], pp["b1l"],
                pp["tin2"], pp["eg2"], pp["b2l"], pp["bias"])
    out_shape = jax.ShapeDtypeStruct((R, lout), x_nchw.dtype)

    flops = 2 * (R * (3 * lin) * lout                       # conv1 (+ folded upsample)
                 + 2 * R * (K * W2 * Cout) * (W2 * Cout)    # conv2, two parities
                 + R * lin * lout                           # shortcut
                 + 2 * lin * Cin + 2 * Cin * lin            # BN1 reduce/expand
                 + 2 * lout * Cout + 2 * Cout * lout)       # BN2 reduce/expand
    bytes_accessed = int(sum(int(np.prod(a.shape)) * a.dtype.itemsize for a in operands)
                         + int(np.prod(out_shape.shape)) * out_shape.dtype.itemsize)

    vmem_spec = pl.BlockSpec(memory_space=pltpu.MemorySpace.VMEM)
    out_packed = pl.pallas_call(
        kernel,
        out_shape=out_shape,
        in_specs=[vmem_spec] * len(operands),
        out_specs=vmem_spec,
        cost_estimate=pl.CostEstimate(flops=int(flops),
                                      transcendentals=int(Cin + Cout),
                                      bytes_accessed=bytes_accessed),
    )(*operands)

    # packed (N*H, 2*W2*Cout) with lanes=(row-parity, x, o)  ->  NCHW
    return jnp.transpose(out_packed.reshape(N, H2, W2, Cout), (0, 3, 1, 2))


# ----------------------------------------------------------------------------
# Pure-JAX reference (for correctness check) -- matches the PyTorch module
# ----------------------------------------------------------------------------
def repeat_pixel_shuffle2_nhwc(x):
    """out.repeat(1,4,1,1) followed by F.pixel_shuffle(out, 2), in NHWC."""
    N, H, W, C = x.shape
    xr = jnp.tile(x, (1, 1, 1, 4))
    xr = xr.reshape(N, H, W, C, 2, 2)
    xr = jnp.transpose(xr, (0, 1, 4, 2, 5, 3))
    return xr.reshape(N, 2 * H, 2 * W, C)


def _ref_conv(x, w, b=None):
    K = w.shape[0]
    p = K // 2
    y = lax.conv_general_dilated(
        x, w, window_strides=(1, 1), padding=[(p, p), (p, p)],
        dimension_numbers=("NHWC", "HWIO", "NHWC"))
    if b is not None:
        y = y + b
    return y


def _ref_bn_relu(x, g, b, eps=1e-5):
    mean = jnp.mean(x, axis=(0, 1, 2), keepdims=True)
    var = jnp.mean((x - mean) ** 2, axis=(0, 1, 2), keepdims=True)
    return jnp.maximum((x - mean) * lax.rsqrt(var + eps) * g + b, 0.0)


def _ref_forward(x_nchw, params):
    x = jnp.transpose(x_nchw, (0, 2, 3, 1))
    shortcut = _ref_conv(repeat_pixel_shuffle2_nhwc(x), params["w_sc"], params["b_sc"])
    out = _ref_bn_relu(x, params["g1"], params["be1"])
    out = _ref_conv(repeat_pixel_shuffle2_nhwc(out), params["w1"])
    out = _ref_bn_relu(out, params["g2"], params["be2"])
    out = _ref_conv(out, params["w2"], params["b2"]) + shortcut
    return jnp.transpose(out, (0, 3, 1, 2))


# ----------------------------------------------------------------------------
# Main
# ----------------------------------------------------------------------------
if __name__ == "__main__":
    C_in, C_out, K = 4, 8, 3
    N, H, W = 2, 16, 16

    key = jax.random.PRNGKey(0)
    k_x, k_sc, k_bsc, k_w1, k_w2, k_b2, k_g1, k_g2 = jax.random.split(key, 8)

    x = jax.random.normal(k_x, (N, C_in, H, W), dtype=jnp.float32)

    def hwio(w_oihw):
        return jnp.transpose(w_oihw, (2, 3, 1, 0))   # (O,I,Kh,Kw) -> (Kh,Kw,I,O)

    params = {
        # shortcut: UpSampleConv(in, out, 1) -> 1x1 conv with bias
        "w_sc": hwio(0.1 * jax.random.normal(k_sc, (C_out, C_in, 1, 1), jnp.float32)),
        "b_sc": 0.1 * jax.random.normal(k_bsc, (C_out,), jnp.float32),
        # conv1: UpSampleConv(in, out, K, bias=False)
        "w1": hwio(0.1 * jax.random.normal(k_w1, (C_out, C_in, K, K), jnp.float32)),
        # conv2: Conv2d(out, out, K) with bias
        "w2": hwio(0.1 * jax.random.normal(k_w2, (C_out, C_out, K, K), jnp.float32)),
        "b2": 0.1 * jax.random.normal(k_b2, (C_out,), jnp.float32),
        # bn1 (in_channels), bn2 (out_channels): affine params
        "g1": 1.0 + 0.1 * jax.random.normal(k_g1, (C_in,), jnp.float32),
        "be1": jnp.zeros((C_in,), jnp.float32) + 0.05,
        "g2": 1.0 + 0.1 * jax.random.normal(k_g2, (C_out,), jnp.float32),
        "be2": jnp.zeros((C_out,), jnp.float32) - 0.05,
    }

    fwd = jax.jit(partial(residual_block_up_forward,
                          N=N, H=H, W=W, Cin=C_in, Cout=C_out, K=K))
    y_ref = jax.block_until_ready(_ref_forward(x, params))

    # --- strict structural/numerical check with f32 folded constants --------------
    pp_f32 = preprocess_params(params, N=N, H=H, W=W, Cin=C_in, Cout=C_out, K=K,
                               param_dtype=jnp.float32)
    y_f32 = jax.block_until_ready(fwd(x, pp_f32))
    assert y_f32.shape == (N, C_out, 2 * H, 2 * W), y_f32.shape
    err_f32 = float(jnp.max(jnp.abs(y_f32 - y_ref)))
    assert jnp.allclose(y_f32, y_ref, rtol=1e-3, atol=1e-3), err_f32

    # --- perf configuration: bf16 folded constants (halves constant DMA, native ----
    # --- MXU bf16 path); tolerance loosened for the bf16 weight/activation rounding.
    pp_bf16 = preprocess_params(params, N=N, H=H, W=W, Cin=C_in, Cout=C_out, K=K,
                                param_dtype=jnp.bfloat16)
    y_bf16 = jax.block_until_ready(fwd(x, pp_bf16))
    err_bf16 = float(jnp.max(jnp.abs(y_bf16 - y_ref)))
    assert jnp.allclose(y_bf16, y_ref, rtol=5e-2, atol=5e-2), err_bf16

    print("KERNEL_OK")
</pallas_src>

<mosaic_0001>
module attributes {stable_mosaic.version = 11 : i64} {
  func.func @_residual_block_up_kernel(%arg0: memref<32x64xf32, #tpu.memory_space<vmem>>, %arg1: memref<192x512xf32, #tpu.memory_space<vmem>>, %arg2: memref<768x256xf32, #tpu.memory_space<vmem>>, %arg3: memref<64x512xf32, #tpu.memory_space<vmem>>, %arg4: memref<64x4xf32, #tpu.memory_space<vmem>>, %arg5: memref<4x64xf32, #tpu.memory_space<vmem>>, %arg6: memref<1x64xf32, #tpu.memory_space<vmem>>, %arg7: memref<512x8xf32, #tpu.memory_space<vmem>>, %arg8: memref<8x512xf32, #tpu.memory_space<vmem>>, %arg9: memref<1x512xf32, #tpu.memory_space<vmem>>, %arg10: memref<1x512xf32, #tpu.memory_space<vmem>>, %arg11: memref<32x512xf32, #tpu.memory_space<vmem>>) attributes {dimension_semantics = [], scalar_prefetch = 0 : i64, scratch_operands = 0 : i64, tpu.core_type = #tpu.core_type<tc>} {
    %c0 = arith.constant 0 : index
    %c0_0 = arith.constant 0 : index
    %0 = vector.load %arg0[%c0, %c0_0] : memref<32x64xf32, #tpu.memory_space<vmem>>, vector<32x64xf32>
    %cst = arith.constant dense<0.000000e+00> : vector<64xf32>
    %1 = vector.multi_reduction <add>, %0, %cst [0] : vector<32x64xf32> to vector<64xf32>
    %2 = vector.shape_cast %1 : vector<64xf32> to vector<1x64xf32>
    %3 = arith.mulf %0, %0 : vector<32x64xf32>
    %cst_1 = arith.constant dense<0.000000e+00> : vector<64xf32>
    %4 = vector.multi_reduction <add>, %3, %cst_1 [0] : vector<32x64xf32> to vector<64xf32>
    %5 = vector.shape_cast %4 : vector<64xf32> to vector<1x64xf32>
    %6 = tpu.concatenate %2, %5 in 0 : vector<1x64xf32>, vector<1x64xf32> -> vector<2x64xf32>
    %c0_2 = arith.constant 0 : index
    %c0_3 = arith.constant 0 : index
    %7 = vector.load %arg4[%c0_2, %c0_3] : memref<64x4xf32, #tpu.memory_space<vmem>>, vector<64x4xf32>
    %cst_4 = arith.constant dense<0.000000e+00> : vector<2x4xf32>
    %8 = tpu.matmul %6, %7, %cst_4 {dimension_numbers = #tpu.dot_dimension_numbers<[1], [0], [0], [1], [0, 0, 1, 1], [], []>} : vector<2x64xf32>, vector<64x4xf32>, vector<2x4xf32> -> vector<2x4xf32>
    %9 = vector.extract_strided_slice %8 {offsets = [0, 0], sizes = [1, 4], strides = [1, 1]} : vector<2x4xf32> to vector<1x4xf32>
    %10 = vector.extract_strided_slice %8 {offsets = [1, 0], sizes = [1, 4], strides = [1, 1]} : vector<2x4xf32> to vector<1x4xf32>
    %11 = arith.mulf %9, %9 : vector<1x4xf32>
    %12 = arith.subf %10, %11 : vector<1x4xf32>
    %cst_5 = arith.constant 9.99999974E-6 : f32
    %13 = vector.broadcast %cst_5 : f32 to vector<1x4xf32>
    %14 = arith.addf %12, %13 : vector<1x4xf32>
    %15 = math.rsqrt %14 : vector<1x4xf32>
    %cst_6 = arith.constant 0.000000e+00 : f32
    %16 = vector.broadcast %cst_6 : f32 to vector<1x4xf32>
    %17 = arith.subf %16, %9 : vector<1x4xf32>
    %18 = arith.mulf %17, %15 : vector<1x4xf32>
    %19 = tpu.concatenate %15, %18 in 0 : vector<1x4xf32>, vector<1x4xf32> -> vector<2x4xf32>
    %c0_7 = arith.constant 0 : index
    %c0_8 = arith.constant 0 : index
    %20 = vector.load %arg5[%c0_7, %c0_8] : memref<4x64xf32, #tpu.memory_space<vmem>>, vector<4x64xf32>
    %cst_9 = arith.constant dense<0.000000e+00> : vector<2x64xf32>
    %21 = tpu.matmul %19, %20, %cst_9 {dimension_numbers = #tpu.dot_dimension_numbers<[1], [0], [0], [1], [0, 0, 1, 1], [], []>} : vector<2x4xf32>, vector<4x64xf32>, vector<2x64xf32> -> vector<2x64xf32>
    %22 = vector.extract_strided_slice %21 {offsets = [0, 0], sizes = [1, 64], strides = [1, 1]} : vector<2x64xf32> to vector<1x64xf32>
    %23 = vector.broadcast %22 : vector<1x64xf32> to vector<32x64xf32>
    %24 = arith.mulf %0, %23 : vector<32x64xf32>
    %25 = vector.extract_strided_slice %21 {offsets = [1, 0], sizes = [1, 64], strides = [1, 1]} : vector<2x64xf32> to vector<1x64xf32>
    %26 = vector.broadcast %25 : vector<1x64xf32> to vector<32x64xf32>
    %27 = arith.addf %24, %26 : vector<32x64xf32>
    %c0_10 = arith.constant 0 : index
    %c0_11 = arith.constant 0 : index
    %28 = vector.load %arg6[%c0_10, %c0_11] : memref<1x64xf32, #tpu.memory_space<vmem>>, vector<1x64xf32>
    %29 = vector.broadcast %28 : vector<1x64xf32> to vector<32x64xf32>
    %30 = arith.addf %27, %29 : vector<32x64xf32>
    %cst_12 = arith.constant 0.000000e+00 : f32
    %31 = vector.broadcast %cst_12 : f32 to vector<32x64xf32>
    %32 = arith.maximumf %30, %31 : vector<32x64xf32>
    %33 = tpu.iota {dimensions = array<i32: 0>} : vector<32x64xi32>
    %c16_i32 = arith.constant 16 : i32
    %c0_i32 = arith.constant 0 : i32
    %34 = arith.cmpi eq, %c16_i32, %c0_i32 : i32
    %c1_i32 = arith.constant 1 : i32
    %35 = arith.select %34, %c1_i32, %c16_i32 : i32
    %36 = vector.broadcast %35 : i32 to vector<32x64xi32>
    %37 = arith.remsi %33, %36 : vector<32x64xi32>
    %c0_i32_13 = arith.constant 0 : i32
    %38 = vector.broadcast %c0_i32_13 : i32 to vector<32x64xi32>
    %39 = arith.cmpi ne, %37, %38 : vector<32x64xi32>
    %c0_i32_14 = arith.constant 0 : i32
    %40 = vector.broadcast %c0_i32_14 : i32 to vector<32x64xi32>
    %41 = arith.cmpi slt, %37, %40 : vector<32x64xi32>
    %c0_i32_15 = arith.constant 0 : i32
    %42 = arith.cmpi slt, %35, %c0_i32_15 : i32
    %43 = vector.broadcast %42 : i1 to vector<32x64xi1>
    %44 = vector.broadcast %43 : vector<32x64xi1> to vector<32x64xi1>
    %45 = arith.xori %41, %44 : vector<32x64xi1>
    %46 = arith.andi %45, %39 : vector<32x64xi1>
    %47 = vector.broadcast %35 : i32 to vector<32x64xi32>
    %48 = arith.addi %37, %47 : vector<32x64xi32>
    %49 = arith.select %46, %48, %37 : vector<32x64xi1>, vector<32x64xi32>
    %c0_i32_16 = arith.constant 0 : i32
    %50 = vector.broadcast %c0_i32_16 : i32 to vector<32x64xi32>
    %51 = arith.cmpi eq, %49, %50 : vector<32x64xi32>
    %c1_i32_17 = arith.constant 1 : i32
    %52 = tpu.dynamic_rotate %32 by %c1_i32_17 dim 0 : vector<32x64xf32>, i32 -> vector<32x64xf32>
    %cst_18 = arith.constant 0.000000e+00 : f32
    %53 = vector.broadcast %cst_18 : f32 to vector<32x64xf32>
    %54 = arith.select %51, %53, %52 : vector<32x64xi1>, vector<32x64xf32>
    %55 = tpu.iota {dimensions = array<i32: 0>} : vector<32x64xi32>
    %c16_i32_19 = arith.constant 16 : i32
    %c0_i32_20 = arith.constant 0 : i32
    %56 = arith.cmpi eq, %c16_i32_19, %c0_i32_20 : i32
    %c1_i32_21 = arith.constant 1 : i32
    %57 = arith.select %56, %c1_i32_21, %c16_i32_19 : i32
    %58 = vector.broadcast %57 : i32 to vector<32x64xi32>
    %59 = arith.remsi %55, %58 : vector<32x64xi32>
    %c0_i32_22 = arith.constant 0 : i32
    %60 = vector.broadcast %c0_i32_22 : i32 to vector<32x64xi32>
    %61 = arith.cmpi ne, %59, %60 : vector<32x64xi32>
    %c0_i32_23 = arith.constant 0 : i32
    %62 = vector.broadcast %c0_i32_23 : i32 to vector<32x64xi32>
    %63 = arith.cmpi slt, %59, %62 : vector<32x64xi32>
    %c0_i32_24 = arith.constant 0 : i32
    %64 = arith.cmpi slt, %57, %c0_i32_24 : i32
    %65 = vector.broadcast %64 : i1 to vector<32x64xi1>
    %66 = vector.broadcast %65 : vector<32x64xi1> to vector<32x64xi1>
    %67 = arith.xori %63, %66 : vector<32x64xi1>
    %68 = arith.andi %67, %61 : vector<32x64xi1>
    %69 = vector.broadcast %57 : i32 to vector<32x64xi32>
    %70 = arith.addi %59, %69 : vector<32x64xi32>
    %71 = arith.select %68, %70, %59 : vector<32x64xi1>, vector<32x64xi32>
    %c15_i32 = arith.constant 15 : i32
    %72 = vector.broadcast %c15_i32 : i32 to vector<32x64xi32>
    %73 = arith.cmpi eq, %71, %72 : vector<32x64xi32>
    %c31_i32 = arith.constant 31 : i32
    %74 = tpu.dynamic_rotate %32 by %c31_i32 dim 0 : vector<32x64xf32>, i32 -> vector<32x64xf32>
    %cst_25 = arith.constant 0.000000e+00 : f32
    %75 = vector.broadcast %cst_25 : f32 to vector<32x64xf32>
    %76 = arith.select %73, %75, %74 : vector<32x64xi1>, vector<32x64xf32>
    %77 = tpu.concatenate %54, %32, %76 in 1 : vector<32x64xf32>, vector<32x64xf32>, vector<32x64xf32> -> vector<32x192xf32>
    %c0_26 = arith.constant 0 : index
    %c0_27 = arith.constant 0 : index
    %78 = vector.load %arg1[%c0_26, %c0_27] : memref<192x512xf32, #tpu.memory_space<vmem>>, vector<192x512xf32>
    %cst_28 = arith.constant dense<0.000000e+00> : vector<32x512xf32>
    %79 = tpu.matmul %77, %78, %cst_28 {dimension_numbers = #tpu.dot_dimension_numbers<[1], [0], [0], [1], [0, 0, 1, 1], [], []>} : vector<32x192xf32>, vector<192x512xf32>, vector<32x512xf32> -> vector<32x512xf32>
    %cst_29 = arith.constant dense<0.000000e+00> : vector<512xf32>
    %80 = vector.multi_reduction <add>, %79, %cst_29 [0] : vector<32x512xf32> to vector<512xf32>
    %81 = vector.shape_cast %80 : vector<512xf32> to vector<1x512xf32>
    %82 = arith.mulf %79, %79 : vector<32x512xf32>
    %cst_30 = arith.constant dense<0.000000e+00> : vector<512xf32>
    %83 = vector.multi_reduction <add>, %82, %cst_30 [0] : vector<32x512xf32> to vector<512xf32>
    %84 = vector.shape_cast %83 : vector<512xf32> to vector<1x512xf32>
    %85 = tpu.concatenate %81, %84 in 0 : vector<1x512xf32>, vector<1x512xf32> -> vector<2x512xf32>
    %c0_31 = arith.constant 0 : index
    %c0_32 = arith.constant 0 : index
    %86 = vector.load %arg7[%c0_31, %c0_32] : memref<512x8xf32, #tpu.memory_space<vmem>>, vector<512x8xf32>
    %cst_33 = arith.constant dense<0.000000e+00> : vector<2x8xf32>
    %87 = tpu.matmul %85, %86, %cst_33 {dimension_numbers = #tpu.dot_dimension_numbers<[1], [0], [0], [1], [0, 0, 1, 1], [], []>} : vector<2x512xf32>, vector<512x8xf32>, vector<2x8xf32> -> vector<2x8xf32>
    %88 = vector.extract_strided_slice %87 {offsets = [0, 0], sizes = [1, 8], strides = [1, 1]} : vector<2x8xf32> to vector<1x8xf32>
    %89 = vector.extract_strided_slice %87 {offsets = [1, 0], sizes = [1, 8], strides = [1, 1]} : vector<2x8xf32> to vector<1x8xf32>
    %90 = arith.mulf %88, %88 : vector<1x8xf32>
    %91 = arith.subf %89, %90 : vector<1x8xf32>
    %cst_34 = arith.constant 9.99999974E-6 : f32
    %92 = vector.broadcast %cst_34 : f32 to vector<1x8xf32>
    %93 = arith.addf %91, %92 : vector<1x8xf32>
    %94 = math.rsqrt %93 : vector<1x8xf32>
    %cst_35 = arith.constant 0.000000e+00 : f32
    %95 = vector.broadcast %cst_35 : f32 to vector<1x8xf32>
    %96 = arith.subf %95, %88 : vector<1x8xf32>
    %97 = arith.mulf %96, %94 : vector<1x8xf32>
    %98 = tpu.concatenate %94, %97 in 0 : vector<1x8xf32>, vector<1x8xf32> -> vector<2x8xf32>
    %c0_36 = arith.constant 0 : index
    %c0_37 = arith.constant 0 : index
    %99 = vector.load %arg8[%c0_36, %c0_37] : memref<8x512xf32, #tpu.memory_space<vmem>>, vector<8x512xf32>
    %cst_38 = arith.constant dense<0.000000e+00> : vector<2x512xf32>
    %100 = tpu.matmul %98, %99, %cst_38 {dimension_numbers = #tpu.dot_dimension_numbers<[1], [0], [0], [1], [0, 0, 1, 1], [], []>} : vector<2x8xf32>, vector<8x512xf32>, vector<2x512xf32> -> vector<2x512xf32>
    %101 = vector.extract_strided_slice %100 {offsets = [0, 0], sizes = [1, 512], strides = [1, 1]} : vector<2x512xf32> to vector<1x512xf32>
    %102 = vector.broadcast %101 : vector<1x512xf32> to vector<32x512xf32>
    %103 = arith.mulf %79, %102 : vector<32x512xf32>
    %104 = vector.extract_strided_slice %100 {offsets = [1, 0], sizes = [1, 512], strides = [1, 1]} : vector<2x512xf32> to vector<1x512xf32>
    %105 = vector.broadcast %104 : vector<1x512xf32> to vector<32x512xf32>
    %106 = arith.addf %103, %105 : vector<32x512xf32>
    %c0_39 = arith.constant 0 : index
    %c0_40 = arith.constant 0 : index
    %107 = vector.load %arg9[%c0_39, %c0_40] : memref<1x512xf32, #tpu.memory_space<vmem>>, vector<1x512xf32>
    %108 = vector.broadcast %107 : vector<1x512xf32> to vector<32x512xf32>
    %109 = arith.addf %106, %108 : vector<32x512xf32>
    %cst_41 = arith.constant 0.000000e+00 : f32
    %110 = vector.broadcast %cst_41 : f32 to vector<32x512xf32>
    %111 = arith.maximumf %109, %110 : vector<32x512xf32>
    %112 = vector.extract_strided_slice %111 {offsets = [0, 0], sizes = [32, 256], strides = [1, 1]} : vector<32x512xf32> to vector<32x256xf32>
    %113 = vector.extract_strided_slice %111 {offsets = [0, 256], sizes = [32, 256], strides = [1, 1]} : vector<32x512xf32> to vector<32x256xf32>
    %114 = tpu.iota {dimensions = array<i32: 0>} : vector<32x256xi32>
    %c16_i32_42 = arith.constant 16 : i32
    %c0_i32_43 = arith.constant 0 : i32
    %115 = arith.cmpi eq, %c16_i32_42, %c0_i32_43 : i32
    %c1_i32_44 = arith.constant 1 : i32
    %116 = arith.select %115, %c1_i32_44, %c16_i32_42 : i32
    %117 = vector.broadcast %116 : i32 to vector<32x256xi32>
    %118 = arith.remsi %114, %117 : vector<32x256xi32>
    %c0_i32_45 = arith.constant 0 : i32
    %119 = vector.broadcast %c0_i32_45 : i32 to vector<32x256xi32>
    %120 = arith.cmpi ne, %118, %119 : vector<32x256xi32>
    %c0_i32_46 = arith.constant 0 : i32
    %121 = vector.broadcast %c0_i32_46 : i32 to vector<32x256xi32>
    %122 = arith.cmpi slt, %118, %121 : vector<32x256xi32>
    %c0_i32_47 = arith.constant 0 : i32
    %123 = arith.cmpi slt, %116, %c0_i32_47 : i32
    %124 = vector.broadcast %123 : i1 to vector<32x256xi1>
    %125 = vector.broadcast %124 : vector<32x256xi1> to vector<32x256xi1>
    %126 = arith.xori %122, %125 : vector<32x256xi1>
    %127 = arith.andi %126, %120 : vector<32x256xi1>
    %128 = vector.broadcast %116 : i32 to vector<32x256xi32>
    %129 = arith.addi %118, %128 : vector<32x256xi32>
    %130 = arith.select %127, %129, %118 : vector<32x256xi1>, vector<32x256xi32>
    %c0_i32_48 = arith.constant 0 : i32
    %131 = vector.broadcast %c0_i32_48 : i32 to vector<32x256xi32>
    %132 = arith.cmpi eq, %130, %131 : vector<32x256xi32>
    %c1_i32_49 = arith.constant 1 : i32
    %133 = tpu.dynamic_rotate %113 by %c1_i32_49 dim 0 : vector<32x256xf32>, i32 -> vector<32x256xf32>
    %cst_50 = arith.constant 0.000000e+00 : f32
    %134 = vector.broadcast %cst_50 : f32 to vector<32x256xf32>
    %135 = arith.select %132, %134, %133 : vector<32x256xi1>, vector<32x256xf32>
    %136 = tpu.concatenate %135, %111 in 1 : vector<32x256xf32>, vector<32x512xf32> -> vector<32x768xf32>
    %c0_51 = arith.constant 0 : index
    %c0_52 = arith.constant 0 : index
    %137 = vector.load %arg2[%c0_51, %c0_52] : memref<768x256xf32, #tpu.memory_space<vmem>>, vector<768x256xf32>
    %cst_53 = arith.constant dense<0.000000e+00> : vector<32x256xf32>
    %138 = tpu.matmul %136, %137, %cst_53 {dimension_numbers = #tpu.dot_dimension_numbers<[1], [0], [0], [1], [0, 0, 1, 1], [], []>} : vector<32x768xf32>, vector<768x256xf32>, vector<32x256xf32> -> vector<32x256xf32>
    %139 = tpu.iota {dimensions = array<i32: 0>} : vector<32x256xi32>
    %c16_i32_54 = arith.constant 16 : i32
    %c0_i32_55 = arith.constant 0 : i32
    %140 = arith.cmpi eq, %c16_i32_54, %c0_i32_55 : i32
    %c1_i32_56 = arith.constant 1 : i32
    %141 = arith.select %140, %c1_i32_56, %c16_i32_54 : i32
    %142 = vector.broadcast %141 : i32 to vector<32x256xi32>
    %143 = arith.remsi %139, %142 : vector<32x256xi32>
    %c0_i32_57 = arith.constant 0 : i32
    %144 = vector.broadcast %c0_i32_57 : i32 to vector<32x256xi32>
    %145 = arith.cmpi ne, %143, %144 : vector<32x256xi32>
    %c0_i32_58 = arith.constant 0 : i32
    %146 = vector.broadcast %c0_i32_58 : i32 to vector<32x256xi32>
    %147 = arith.cmpi slt, %143, %146 : vector<32x256xi32>
    %c0_i32_59 = arith.constant 0 : i32
    %148 = arith.cmpi slt, %141, %c0_i32_59 : i32
    %149 = vector.broadcast %148 : i1 to vector<32x256xi1>
    %150 = vector.broadcast %149 : vector<32x256xi1> to vector<32x256xi1>
    %151 = arith.xori %147, %150 : vector<32x256xi1>
    %152 = arith.andi %151, %145 : vector<32x256xi1>
    %153 = vector.broadcast %141 : i32 to vector<32x256xi32>
    %154 = arith.addi %143, %153 : vector<32x256xi32>
    %155 = arith.select %152, %154, %143 : vector<32x256xi1>, vector<32x256xi32>
    %c15_i32_60 = arith.constant 15 : i32
    %156 = vector.broadcast %c15_i32_60 : i32 to vector<32x256xi32>
    %157 = arith.cmpi eq, %155, %156 : vector<32x256xi32>
    %c31_i32_61 = arith.constant 31 : i32
    %158 = tpu.dynamic_rotate %112 by %c31_i32_61 dim 0 : vector<32x256xf32>, i32 -> vector<32x256xf32>
    %cst_62 = arith.constant 0.000000e+00 : f32
    %159 = vector.broadcast %cst_62 : f32 to vector<32x256xf32>
    %160 = arith.select %157, %159, %158 : vector<32x256xi1>, vector<32x256xf32>
    %161 = tpu.concatenate %111, %160 in 1 : vector<32x512xf32>, vector<32x256xf32> -> vector<32x768xf32>
    %c0_63 = arith.constant 0 : index
    %c0_64 = arith.constant 0 : index
    %162 = vector.load %arg2[%c0_63, %c0_64] : memref<768x256xf32, #tpu.memory_space<vmem>>, vector<768x256xf32>
    %cst_65 = arith.constant dense<0.000000e+00> : vector<32x256xf32>
    %163 = tpu.matmul %161, %162, %cst_65 {dimension_numbers = #tpu.dot_dimension_numbers<[1], [0], [0], [1], [0, 0, 1, 1], [], []>} : vector<32x768xf32>, vector<768x256xf32>, vector<32x256xf32> -> vector<32x256xf32>
    %164 = tpu.concatenate %138, %163 in 1 : vector<32x256xf32>, vector<32x256xf32> -> vector<32x512xf32>
    %c0_66 = arith.constant 0 : index
    %c0_67 = arith.constant 0 : index
    %165 = vector.load %arg3[%c0_66, %c0_67] : memref<64x512xf32, #tpu.memory_space<vmem>>, vector<64x512xf32>
    %cst_68 = arith.constant dense<0.000000e+00> : vector<32x512xf32>
    %166 = tpu.matmul %0, %165, %cst_68 {dimension_numbers = #tpu.dot_dimension_numbers<[1], [0], [0], [1], [0, 0, 1, 1], [], []>} : vector<32x64xf32>, vector<64x512xf32>, vector<32x512xf32> -> vector<32x512xf32>
    %167 = arith.addf %164, %166 : vector<32x512xf32>
    %c0_69 = arith.constant 0 : index
    %c0_70 = arith.constant 0 : index
    %168 = vector.load %arg10[%c0_69, %c0_70] : memref<1x512xf32, #tpu.memory_space<vmem>>, vector<1x512xf32>
    %169 = vector.broadcast %168 : vector<1x512xf32> to vector<32x512xf32>
    %170 = arith.addf %167, %169 : vector<32x512xf32>
    %c0_71 = arith.constant 0 : index
    %c0_72 = arith.constant 0 : index
    %171 = vector.load %arg11[%c0_71, %c0_72] : memref<32x512xf32, #tpu.memory_space<vmem>>, vector<32x512xf32>
    tpu.vector_store %arg11[%c0_71, %c0_72], %170 {strides = array<i32>} : memref<32x512xf32, #tpu.memory_space<vmem>>, vector<32x512xf32>,
    return
  }
}

</mosaic_0001>

<llo_original>
// kernel: residual_block_up_forward.1
$region0: #{residual_block_up_forward.1}
  #allocation0 [shape = 'u32[]', space=smem, size = 0x4, offset = 0x4, fixed_abs, tag = 'smem constant byte address 0x4 - core index']
  #allocation1 [shape = 'u32[72,128]{1,0:T(1,128)}', space=vmem, size = 0x9000, scoped, tag = 'internal scratch']
  %s0 = inlined_call_operand.vmem [shape: f32[32,64], index: 0, kind: input, shape index: {}]
  %s1 = inlined_call_operand.vmem [shape: f32[192,512], index: 1, kind: input, shape index: {}]
  %s2 = inlined_call_operand.hbm [shape: f32[768,256], index: 2, kind: input, shape index: {}]
  %s3 = inlined_call_operand.vmem [shape: f32[64,512], index: 3, kind: input, shape index: {}]
  %s4 = inlined_call_operand.vmem [shape: f32[64,4], index: 4, kind: input, shape index: {}]
  %s5 = inlined_call_operand.vmem [shape: f32[4,64], index: 5, kind: input, shape index: {}]
  %s6 = inlined_call_operand.vmem [shape: f32[1,64], index: 6, kind: input, shape index: {}]
  %s7 = inlined_call_operand.vmem [shape: f32[512,8], index: 7, kind: input, shape index: {}]
  %s8 = inlined_call_operand.vmem [shape: f32[8,512], index: 8, kind: input, shape index: {}]
  %s9 = inlined_call_operand.vmem [shape: f32[1,512], index: 9, kind: input, shape index: {}]
  %s10 = inlined_call_operand.vmem [shape: f32[1,512], index: 10, kind: input, shape index: {}]
  %s11 = inlined_call_operand.vmem [shape: f32[32,512], index: 11, kind: output, shape index: {}]
  %s12 = sld [smem:[#allocation0]]
  $region58: #{residual_block_up_forward.1} parent=0
    _
  %s14 = ssub.s32 1, %s12
  %s15 = scalar_select 0, %s14, %s12
  $region1: #{residual_block_up_forward.1} parent=0
    #allocation2 [shape = 'u8[786432]{0}', space=vmem, size = 0xc0000, scoped, tag = 'input window, operand 2, single buffered']
    #allocation3 [shape = 's32[1]{0}', space=sflag, size = 0x4, scoped, tag = 'scoped memory for residual_block_up_forward.1']
    %16 = vsyncpa [#allocation3], 0
    // Predicated region
    $region2: #{residual_block_up_forward.1} parent=1 // pred_check
      _
    $region3: #{residual_block_up_forward.1} parent=1 // pred_check_branch
      %18 = sbr.rel (0) target = $region5
    $region4: #{residual_block_up_forward.1} parent=1 // pred_region
      _
    $region5: #{residual_block_up_forward.1} parent=1 // pred_fallthru
      _
    // Predicated region
    $region6: #{residual_block_up_forward.1} parent=1 // pred_check
      _
    $region7: #{residual_block_up_forward.1} parent=1 // pred_check_branch
      %20 = sbr.rel (0) target = $region9
    $region8: #{residual_block_up_forward.1} parent=1 // pred_region
      _
    $region9: #{residual_block_up_forward.1} parent=1 // pred_fallthru
      _
    // Predicated region
    $region10: #{residual_block_up_forward.1} parent=1 // pred_check
      _
    $region11: #{residual_block_up_forward.1} parent=1 // pred_check_branch
      %22 = sbr.rel (0) target = $region13
    $region12: #{residual_block_up_forward.1} parent=1 // pred_region
      %24 = vsyncadd [#allocation3], 0
      %s25 = sshll.u32 %s2, 4
      %s26 = int_to_ptr.hbm [resolvable:$true] %s25
      %s27 = sshll.u32 [#allocation2], 4
      %s28 = int_to_ptr.vmem [resolvable:$true] %s27
      %33 = dma.hbm_to_vmem [thread:$0]  %s26, 24576, %s28, [#allocation3], 256, 256, 16
    $region13: #{residual_block_up_forward.1} parent=1 // pred_fallthru
      _
    // Predicated region
    $region14: #{residual_block_up_forward.1} parent=1 // pred_check
      _
    $region15: #{residual_block_up_forward.1} parent=1 // pred_check_branch
      %35 = sbr.rel (0) target = $region17
    $region16: #{residual_block_up_forward.1} parent=1 // pred_region
      _
    $region17: #{residual_block_up_forward.1} parent=1 // pred_fallthru
      _
    // Predicated region
    $region18: #{residual_block_up_forward.1} parent=1 // pred_check
      _
    $region19: #{residual_block_up_forward.1} parent=1 // pred_check_branch
      %37 = sbr.rel (0) target = $region21
    $region20: #{residual_block_up_forward.1} parent=1 // pred_region
      _
    $region21: #{residual_block_up_forward.1} parent=1 // pred_fallthru
      _
    // Predicated region
    $region22: #{residual_block_up_forward.1} parent=1 // pred_check
      _
    $region23: #{residual_block_up_forward.1} parent=1 // pred_check_branch
      %39 = sbr.rel (0) target = $region25
    $region24: #{residual_block_up_forward.1} parent=1 // pred_region
      _
    $region25: #{residual_block_up_forward.1} parent=1 // pred_fallthru
      _
    // Predicated region
    $region26: #{residual_block_up_forward.1} parent=1 // pred_check
      _
    $region27: #{residual_block_up_forward.1} parent=1 // pred_check_branch
      %41 = sbr.rel (0) target = $region29
    $region28: #{residual_block_up_forward.1} parent=1 // pred_region
      _
    $region29: #{residual_block_up_forward.1} parent=1 // pred_fallthru
      _
    // Predicated region
    $region30: #{residual_block_up_forward.1} parent=1 // pred_check
      _
    $region31: #{residual_block_up_forward.1} parent=1 // pred_check_branch
      %43 = sbr.rel (0) target = $region33
    $region32: #{residual_block_up_forward.1} parent=1 // pred_region
      _
    $region33: #{residual_block_up_forward.1} parent=1 // pred_fallthru
      _
    // Predicated region
    $region34: #{residual_block_up_forward.1} parent=1 // pred_check
      _
    $region35: #{residual_block_up_forward.1} parent=1 // pred_check_branch
      %45 = sbr.rel (0) target = $region37
    $region36: #{residual_block_up_forward.1} parent=1 // pred_region
      _
    $region37: #{residual_block_up_forward.1} parent=1 // pred_fallthru
      _
    // Predicated region
    $region38: #{residual_block_up_forward.1} parent=1 // pred_check
      _
    $region39: #{residual_block_up_forward.1} parent=1 // pred_check_branch
      %47 = sbr.rel (0) target = $region41
    $region40: #{residual_block_up_forward.1} parent=1 // pred_region
      _
    $region41: #{residual_block_up_forward.1} parent=1 // pred_fallthru
      _
    // Predicated region
    $region42: #{residual_block_up_forward.1} parent=1 // pred_check
      _
    $region43: #{residual_block_up_forward.1} parent=1 // pred_check_branch
      %49 = sbr.rel (0) target = $region45
    $region44: #{residual_block_up_forward.1} parent=1 // pred_region
      _
    $region45: #{residual_block_up_forward.1} parent=1 // pred_fallthru
      _
    // Predicated region
    $region46: #{residual_block_up_forward.1} parent=1 // pred_check
      _
    $region47: #{residual_block_up_forward.1} parent=1 // pred_check_branch
      %51 = sbr.rel (0) target = $region49
    $region48: #{residual_block_up_forward.1} parent=1 // pred_region
      %53 = dma.done [#allocation3], 24576
    $region49: #{residual_block_up_forward.1} parent=1 // pred_fallthru
      _
    %v54 = vld [vmem:[%s0] sm:$0xff]
    %v55 = vld [vmem:[%s0 + $0x8] sm:$0xff]
    %v56 = vld [vmem:[%s0 + $0x10] sm:$0xff]
    %v57 = vld [vmem:[%s0 + $0x18] sm:$0xff]
    %vm58 = vcmask 523264
    %v59 = vsel %vm58, %v54, 0.0
    %v60 = vsel %vm58, %v55, 0.0
    %v61 = vadd.f32 %v59, %v60
    %v62 = vsel %vm58, %v56, 0.0
    %v63 = vadd.f32 %v61, %v62
    %v64 = vsel %vm58, %v57, 0.0
    %v65 = vadd.f32 %v63, %v64
    %v66 = vrot.slane %v65, 4
    %v67 = vadd.f32 %v65, %v66
    %v68 = vrot.slane %v67, 2
    %v69 = vadd.f32 %v67, %v68
    %v70 = vrot.slane %v69, 1
    %v71 = vadd.f32 %v69, %v70
    %v72 = vmul.f32 %v54, %v54
    %v73 = vmul.f32 %v55, %v55
    %v74 = vmul.f32 %v56, %v56
    %v75 = vmul.f32 %v57, %v57
    %v76 = vsel %vm58, %v72, 0.0
    %v77 = vsel %vm58, %v73, 0.0
    %v78 = vadd.f32 %v76, %v77
    %v79 = vsel %vm58, %v74, 0.0
    %v80 = vadd.f32 %v78, %v79
    %v81 = vsel %vm58, %v75, 0.0
    %v82 = vadd.f32 %v80, %v81
    %v83 = vrot.slane %v82, 4
    %v84 = vadd.f32 %v82, %v83
    %v85 = vrot.slane %v84, 2
    %v86 = vadd.f32 %v84, %v85
    %v87 = vrot.slane %v86, 1
    %v88 = vadd.f32 %v86, %v87
    %vm89 = vcmask 1040384
    %v90 = vsel %vm89, %v71, %v88
    %v91 = vld [vmem:[%s4] sm:$0xff]
    %v92 = vld [vmem:[%s4 + $0x8] sm:$0xff]
    %v93 = vld [vmem:[%s4 + $0x10] sm:$0xff]
    %v94 = vld [vmem:[%s4 + $0x18] sm:$0xff]
    %v95 = vld [vmem:[%s4 + $0x20] sm:$0xff]
    %v96 = vld [vmem:[%s4 + $0x28] sm:$0xff]
    %v97 = vld [vmem:[%s4 + $0x30] sm:$0xff]
    %v98 = vld [vmem:[%s4 + $0x38] sm:$0xff]
    %v100 = vsel %vm58, %v90, 0
    %102 = vmatpush.msra.mxu0 0.0
    %103 = vmatpush.msra.mxu0 0.0
    %104 = vmatpush.msra.mxu0 0.0
    %105 = vmatpush.msra.mxu0 0.0
    %106 = vmatpush.msra.mxu0 0.0
    %107 = vmatpush.msra.mxu0 0.0
    %108 = vmatpush.msra.mxu0 0.0
    %109 = vmatpush.msra.mxu0 0.0
    %110 = vmatpush.msra.mxu0 %v98
    %111 = vmatpush.msra.mxu0 %v97
    %112 = vmatpush.msra.mxu0 %v96
    %113 = vmatpush.msra.mxu0 %v95
    %114 = vmatpush.msra.mxu0 %v94
    %115 = vmatpush.msra.mxu0 %v93
    %116 = vmatpush.msra.mxu0 %v92
    %117 = vmatpush.msra.mxu0 %v91
    %118 = vmatmul.f32.gmra.mxu0 %v100
    %v119 = vpop.f32.mrf.mxu0
    %v120 = vadd.f32 0.0, %v119
    %121 = vdwg.mxu0
    %v122 = vmul.f32 %v120, %v120
    %v124 = vrot.slane %v122, 7
    %v126 = vsub.f32 %v120, %v124
    %v127 = vadd.f32 %v126, 1e-05
    %v128 = vrsqrt.pop %v127
    %v129 = vmul.f32 %v128, %v127
    %v130 = vmul.f32 %v129, %v128
    %v131 = vmul.f32 0.5, %v130
    %v132 = vsub.f32 1.5, %v131
    %v133 = vmul.f32 %v128, %v132
    %vm134 = vweird.f32 %v127
    %vm135 = vweird.f32 %v128
    %vm136 = vmor %vm134, %vm135
    %v137 = vsel %vm136, %v128, %v133
    %v138 = vsub.f32 0.0, %v120
    %v140 = vrot.slane %v137, 1
    %v142 = vmul.f32 %v138, %v140
    %v144 = vrot.slane %v142, 7
    %v146 = vsel %vm89, %v140, %v144
    %v147 = vld [vmem:[%s5] sm:$0xf]
    %vm148 = vcmask 31744
    %v150 = vsel %vm148, %v146, 0
    %vm152 = vcmask 1043456
    %v154 = vsel %vm152, %v147, 0
    %156 = vmatpush.msra.mxu0 0.0
    %157 = vmatpush.msra.mxu0 0.0
    %158 = vmatpush.msra.mxu0 0.0
    %159 = vmatpush.msra.mxu0 0.0
    %160 = vmatpush.msra.mxu0 0.0
    %161 = vmatpush.msra.mxu0 0.0
    %162 = vmatpush.msra.mxu0 0.0
    %163 = vmatpush.msra.mxu0 0.0
    %164 = vmatpush.msra.mxu0 0.0
    %165 = vmatpush.msra.mxu0 0.0
    %166 = vmatpush.msra.mxu0 0.0
    %167 = vmatpush.msra.mxu0 0.0
    %168 = vmatpush.msra.mxu0 0.0
    %169 = vmatpush.msra.mxu0 0.0
    %170 = vmatpush.msra.mxu0 0.0
    %171 = vmatpush.msra.mxu0 %v154
    %172 = vmatmul.f32.gmra.mxu0 %v150
    %v173 = vpop.f32.mrf.mxu0
    %v174 = vadd.f32 0.0, %v173
    %175 = vdwg.mxu0
    %v176 = vperm.slane %v174, 0
    %v177 = vmul.f32 %v54, %v176
    %v178 = vmul.f32 %v55, %v176
    %v179 = vmul.f32 %v56, %v176
    %v180 = vmul.f32 %v57, %v176
    %v181 = vperm.slane %v174, 1
    %v182 = vadd.f32 %v177, %v181
    %v183 = vadd.f32 %v178, %v181
    %v184 = vadd.f32 %v179, %v181
    %v185 = vadd.f32 %v180, %v181
    %v186 = vld [vmem:[%s6] sm:$0x1]
    %v188 = vperm.slane %v186, 0
    %v190 = vadd.f32 %v182, %v188
    %v191 = vadd.f32 %v183, %v188
    %v192 = vadd.f32 %v184, %v188
    %v193 = vadd.f32 %v185, %v188
    %v194 = vmax.f32 %v190, 0.0
    %v195 = vmax.f32 %v191, 0.0
    %v196 = vmax.f32 %v192, 0.0
    %v197 = vmax.f32 %v193, 0.0
    %v198 = vlaneseq
    %v199 = vshrl.u32 %v198, 7
    %v200 = vadd.s32 %v199, 8
    %v201 = vadd.s32 %v199, 16
    %v202 = vadd.s32 %v199, 24
    %vm203 = vcmp.lt.s32.totalorder %v199, 0
    %v204 = vsub.s32 0, %v199
    %v205 = vsel %vm203, %v204, %v199
    %v206 = vshrl.u32 %v205, 4
    %v207 = vand.u32 %v205, 15
    %v208 = vsub.s32 0, %v207
    %v209 = vsel %vm203, %v208, %v207
    %vm210 = vcmp.lt.s32.totalorder %v200, 0
    %v211 = vsub.s32 0, %v200
    %v212 = vsel %vm210, %v211, %v200
    %v213 = vshrl.u32 %v212, 4
    %v214 = vand.u32 %v212, 15
    %v215 = vsub.s32 0, %v214
    %v216 = vsel %vm210, %v215, %v214
    %vm217 = vcmp.lt.s32.totalorder %v201, 0
    %v218 = vsub.s32 0, %v201
    %v219 = vsel %vm217, %v218, %v201
    %v220 = vshrl.u32 %v219, 4
    %v221 = vand.u32 %v219, 15
    %v222 = vsub.s32 0, %v221
    %v223 = vsel %vm217, %v222, %v221
    %vm224 = vcmp.lt.s32.totalorder %v202, 0
    %v225 = vsub.s32 0, %v202
    %v226 = vsel %vm224, %v225, %v202
    %v227 = vshrl.u32 %v226, 4
    %v228 = vand.u32 %v226, 15
    %v229 = vsub.s32 0, %v228
    %v230 = vsel %vm224, %v229, %v228
    %vm231 = vcmp.ne.s32.totalorder %v209, 0
    %vm232 = vcmp.ne.s32.totalorder %v216, 0
    %vm233 = vcmp.ne.s32.totalorder %v223, 0
    %vm234 = vcmp.ne.s32.totalorder %v230, 0
    %vm235 = vcmp.lt.s32.totalorder %v209, 0
    %vm236 = vcmp.lt.s32.totalorder %v216, 0
    %vm237 = vcmp.lt.s32.totalorder %v223, 0
    %vm238 = vcmp.lt.s32.totalorder %v230, 0
    %vm239 = vmand %vm235, %vm231
    %vm240 = vmand %vm236, %vm232
    %vm241 = vmand %vm237, %vm233
    %vm242 = vmand %vm238, %vm234
    %v243 = vadd.s32 %v209, 16
    %v244 = vadd.s32 %v216, 16
    %v245 = vadd.s32 %v223, 16
    %v246 = vadd.s32 %v230, 16
    %v247 = vsel %vm239, %v243, %v209
    %v248 = vsel %vm240, %v244, %v216
    %v249 = vsel %vm241, %v245, %v223
    %v250 = vsel %vm242, %v246, %v230
    %vm251 = vcmp.eq.s32.totalorder %v247, 0
    %vm252 = vcmp.eq.s32.totalorder %v248, 0
    %vm253 = vcmp.eq.s32.totalorder %v249, 0
    %vm254 = vcmp.eq.s32.totalorder %v250, 0
    %v255 = vrot.slane %v194, 7
    %v256 = vrot.slane %v195, 7
    %v257 = vrot.slane %v196, 7
    %v258 = vrot.slane %v197, 7
    %vm259 = vcmp.lt.s32.totalorder %v199, 1
    %v260 = vsel %vm259, %v257, %v258
    %v261 = vsel %vm259, %v256, %v257
    %v262 = vsel %vm259, %v255, %v256
    %v263 = vsel %vm259, %v258, %v255
    %v264 = vsel %vm251, 0.0, %v263
    %v265 = vsel %vm252, 0.0, %v262
    %v266 = vsel %vm253, 0.0, %v261
    %v267 = vsel %vm254, 0.0, %v260
    %vm268 = vcmp.eq.s32.totalorder %v247, 15
    %vm269 = vcmp.eq.s32.totalorder %v248, 15
    %vm270 = vcmp.eq.s32.totalorder %v249, 15
    %vm271 = vcmp.eq.s32.totalorder %v250, 15
    %v272 = vrot.slane %v194, 1
    %v273 = vrot.slane %v195, 1
    %v274 = vrot.slane %v196, 1
    %v275 = vrot.slane %v197, 1
    %vm276 = vcmp.lt.s32.totalorder %v199, 7
    %v277 = vsel %vm276, %v274, %v275
    %v278 = vsel %vm276, %v273, %v274
    %v279 = vsel %vm276, %v272, %v273
    %v280 = vsel %vm276, %v275, %v272
    %v281 = vsel %vm268, 0.0, %v279
    %v282 = vsel %vm269, 0.0, %v278
    %v283 = vsel %vm270, 0.0, %v277
    %v284 = vsel %vm271, 0.0, %v280
    %289 = vrot.lane.b32.xlu0 %v194, 64
    %v290 = vpop.permute.xlu0 %289
    %291 = vrot.lane.b32.xlu0 %v195, 64
    %v292 = vpop.permute.xlu0 %291
    %293 = vrot.lane.b32.xlu0 %v196, 64
    %v294 = vpop.permute.xlu0 %293
    %295 = vrot.lane.b32.xlu0 %v197, 64
    %v296 = vpop.permute.xlu0 %295
    %v301 = vsel %vm58, %v264, %v290
    %v302 = vsel %vm58, %v265, %v292
    %v303 = vsel %vm58, %v266, %v294
    %v304 = vsel %vm58, %v267, %v296
    %v305 = vld [vmem:[%s1] sm:$0xff]
    %v306 = vld [vmem:[%s1 + $0x8] sm:$0xff]
    %v307 = vld [vmem:[%s1 + $0x10] sm:$0xff]
    %v308 = vld [vmem:[%s1 + $0x18] sm:$0xff]
    %v309 = vld [vmem:[%s1 + $0x20] sm:$0xff]
    %v310 = vld [vmem:[%s1 + $0x28] sm:$0xff]
    %v311 = vld [vmem:[%s1 + $0x30] sm:$0xff]
    %v312 = vld [vmem:[%s1 + $0x38] sm:$0xff]
    %v313 = vld [vmem:[%s1 + $0x40] sm:$0xff]
    %v314 = vld [vmem:[%s1 + $0x48] sm:$0xff]
    %v315 = vld [vmem:[%s1 + $0x50] sm:$0xff]
    %v316 = vld [vmem:[%s1 + $0x58] sm:$0xff]
    %v317 = vld [vmem:[%s1 + $0x60] sm:$0xff]
    %v318 = vld [vmem:[%s1 + $0x68] sm:$0xff]
    %v319 = vld [vmem:[%s1 + $0x70] sm:$0xff]
    %v320 = vld [vmem:[%s1 + $0x78] sm:$0xff]
    %v321 = vld [vmem:[%s1 + $0x80] sm:$0xff]
    %v322 = vld [vmem:[%s1 + $0x88] sm:$0xff]
    %v323 = vld [vmem:[%s1 + $0x90] sm:$0xff]
    %v324 = vld [vmem:[%s1 + $0x98] sm:$0xff]
    %v325 = vld [vmem:[%s1 + $0xa0] sm:$0xff]
    %v326 = vld [vmem:[%s1 + $0xa8] sm:$0xff]
    %v327 = vld [vmem:[%s1 + $0xb0] sm:$0xff]
    %v328 = vld [vmem:[%s1 + $0xb8] sm:$0xff]
    %v329 = vld [vmem:[%s1 + $0xc0] sm:$0xff]
    %v330 = vld [vmem:[%s1 + $0xc8] sm:$0xff]
    %v331 = vld [vmem:[%s1 + $0xd0] sm:$0xff]
    %v332 = vld [vmem:[%s1 + $0xd8] sm:$0xff]
    %v333 = vld [vmem:[%s1 + $0xe0] sm:$0xff]
    %v334 = vld [vmem:[%s1 + $0xe8] sm:$0xff]
    %v335 = vld [vmem:[%s1 + $0xf0] sm:$0xff]
    %v336 = vld [vmem:[%s1 + $0xf8] sm:$0xff]
    %v337 = vld [vmem:[%s1 + $0x100] sm:$0xff]
    %v338 = vld [vmem:[%s1 + $0x108] sm:$0xff]
    %v339 = vld [vmem:[%s1 + $0x110] sm:$0xff]
    %v340 = vld [vmem:[%s1 + $0x118] sm:$0xff]
    %v341 = vld [vmem:[%s1 + $0x120] sm:$0xff]
    %v342 = vld [vmem:[%s1 + $0x128] sm:$0xff]
    %v343 = vld [vmem:[%s1 + $0x130] sm:$0xff]
    %v344 = vld [vmem:[%s1 + $0x138] sm:$0xff]
    %v345 = vld [vmem:[%s1 + $0x140] sm:$0xff]
    %v346 = vld [vmem:[%s1 + $0x148] sm:$0xff]
    %v347 = vld [vmem:[%s1 + $0x150] sm:$0xff]
    %v348 = vld [vmem:[%s1 + $0x158] sm:$0xff]
    %v349 = vld [vmem:[%s1 + $0x160] sm:$0xff]
    %v350 = vld [vmem:[%s1 + $0x168] sm:$0xff]
    %v351 = vld [vmem:[%s1 + $0x170] sm:$0xff]
    %v352 = vld [vmem:[%s1 + $0x178] sm:$0xff]
    %v353 = vld [vmem:[%s1 + $0x180] sm:$0xff]
    %v354 = vld [vmem:[%s1 + $0x188] sm:$0xff]
    %v355 = vld [vmem:[%s1 + $0x190] sm:$0xff]
    %v356 = vld [vmem:[%s1 + $0x198] sm:$0xff]
    %v357 = vld [vmem:[%s1 + $0x1a0] sm:$0xff]
    %v358 = vld [vmem:[%s1 + $0x1a8] sm:$0xff]
    %v359 = vld [vmem:[%s1 + $0x1b0] sm:$0xff]
    %v360 = vld [vmem:[%s1 + $0x1b8] sm:$0xff]
    %v361 = vld [vmem:[%s1 + $0x1c0] sm:$0xff]
    %v362 = vld [vmem:[%s1 + $0x1c8] sm:$0xff]
    %v363 = vld [vmem:[%s1 + $0x1d0] sm:$0xff]
    %v364 = vld [vmem:[%s1 + $0x1d8] sm:$0xff]
    %v365 = vld [vmem:[%s1 + $0x1e0] sm:$0xff]
    %v366 = vld [vmem:[%s1 + $0x1e8] sm:$0xff]
    %v367 = vld [vmem:[%s1 + $0x1f0] sm:$0xff]
    %v368 = vld [vmem:[%s1 + $0x1f8] sm:$0xff]
    %v369 = vld [vmem:[%s1 + $0x200] sm:$0xff]
    %v370 = vld [vmem:[%s1 + $0x208] sm:$0xff]
    %v371 = vld [vmem:[%s1 + $0x210] sm:$0xff]
    %v372 = vld [vmem:[%s1 + $0x218] sm:$0xff]
    %v373 = vld [vmem:[%s1 + $0x220] sm:$0xff]
    %v374 = vld [vmem:[%s1 + $0x228] sm:$0xff]
    %v375 = vld [vmem:[%s1 + $0x230] sm:$0xff]
    %v376 = vld [vmem:[%s1 + $0x238] sm:$0xff]
    %v377 = vld [vmem:[%s1 + $0x240] sm:$0xff]
    %v378 = vld [vmem:[%s1 + $0x248] sm:$0xff]
    %v379 = vld [vmem:[%s1 + $0x250] sm:$0xff]
    %v380 = vld [vmem:[%s1 + $0x258] sm:$0xff]
    %v381 = vld [vmem:[%s1 + $0x260] sm:$0xff]
    %v382 = vld [vmem:[%s1 + $0x268] sm:$0xff]
    %v383 = vld [vmem:[%s1 + $0x270] sm:$0xff]
    %v384 = vld [vmem:[%s1 + $0x278] sm:$0xff]
    %v385 = vld [vmem:[%s1 + $0x280] sm:$0xff]
    %v386 = vld [vmem:[%s1 + $0x288] sm:$0xff]
    %v387 = vld [vmem:[%s1 + $0x290] sm:$0xff]
    %v388 = vld [vmem:[%s1 + $0x298] sm:$0xff]
    %v389 = vld [vmem:[%s1 + $0x2a0] sm:$0xff]
    %v390 = vld [vmem:[%s1 + $0x2a8] sm:$0xff]
    %v391 = vld [vmem:[%s1 + $0x2b0] sm:$0xff]
    %v392 = vld [vmem:[%s1 + $0x2b8] sm:$0xff]
    %v393 = vld [vmem:[%s1 + $0x2c0] sm:$0xff]
    %v394 = vld [vmem:[%s1 + $0x2c8] sm:$0xff]
    %v395 = vld [vmem:[%s1 + $0x2d0] sm:$0xff]
    %v396 = vld [vmem:[%s1 + $0x2d8] sm:$0xff]
    %v397 = vld [vmem:[%s1 + $0x2e0] sm:$0xff]
    %v398 = vld [vmem:[%s1 + $0x2e8] sm:$0xff]
    %v399 = vld [vmem:[%s1 + $0x2f0] sm:$0xff]
    %v400 = vld [vmem:[%s1 + $0x2f8] sm:$0xff]
    %v402 = vsel %vm58, %v281, 0
    %v405 = vsel %vm58, %v282, 0
    %v408 = vsel %vm58, %v283, 0
    %v411 = vsel %vm58, %v284, 0
    %413 = vmatpush.msra.mxu0 %v365
    %414 = vmatpush.msra.mxu0 %v361
    %415 = vmatpush.msra.mxu0 %v357
    %416 = vmatpush.msra.mxu0 %v353
    %417 = vmatpush.msra.mxu0 %v349
    %418 = vmatpush.msra.mxu0 %v345
    %419 = vmatpush.msra.mxu0 %v341
    %420 = vmatpush.msra.mxu0 %v337
    %421 = vmatpush.msra.mxu0 %v333
    %422 = vmatpush.msra.mxu0 %v329
    %423 = vmatpush.msra.mxu0 %v325
    %424 = vmatpush.msra.mxu0 %v321
    %425 = vmatpush.msra.mxu0 %v317
    %426 = vmatpush.msra.mxu0 %v313
    %427 = vmatpush.msra.mxu0 %v309
    %428 = vmatpush.msra.mxu0 %v305
    %429 = vmatmul.f32.gmra.mxu0 %v301
    %v430 = vpop.f32.mrf.mxu0
    %v431 = vadd.f32 0.0, %v430
    %432 = vmatmul.f32.gmra.mxu0 %v302
    %v433 = vpop.f32.mrf.mxu0
    %v434 = vadd.f32 0.0, %v433
    %435 = vmatmul.f32.gmra.mxu0 %v303
    %v436 = vpop.f32.mrf.mxu0
    %v437 = vadd.f32 0.0, %v436
    %438 = vmatmul.f32.gmra.mxu0 %v304
    %v439 = vpop.f32.mrf.mxu0
    %v440 = vadd.f32 0.0, %v439
    %441 = vdwg.mxu0
    %442 = vmatpush.msra.mxu0 0.0
    %443 = vmatpush.msra.mxu0 0.0
    %444 = vmatpush.msra.mxu0 0.0
    %445 = vmatpush.msra.mxu0 0.0
    %446 = vmatpush.msra.mxu0 0.0
    %447 = vmatpush.msra.mxu0 0.0
    %448 = vmatpush.msra.mxu0 0.0
    %449 = vmatpush.msra.mxu0 0.0
    %450 = vmatpush.msra.mxu0 %v397
    %451 = vmatpush.msra.mxu0 %v393
    %452 = vmatpush.msra.mxu0 %v389
    %453 = vmatpush.msra.mxu0 %v385
    %454 = vmatpush.msra.mxu0 %v381
    %455 = vmatpush.msra.mxu0 %v377
    %456 = vmatpush.msra.mxu0 %v373
    %457 = vmatpush.msra.mxu0 %v369
    %458 = vmatmul.f32.gmra.mxu0 %v402
    %v459 = vpop.f32.mrf.mxu0
    %v460 = vadd.f32 %v431, %v459
    %461 = vmatmul.f32.gmra.mxu0 %v405
    %v462 = vpop.f32.mrf.mxu0
    %v463 = vadd.f32 %v434, %v462
    %464 = vmatmul.f32.gmra.mxu0 %v408
    %v465 = vpop.f32.mrf.mxu0
    %v466 = vadd.f32 %v437, %v465
    %467 = vmatmul.f32.gmra.mxu0 %v411
    %v468 = vpop.f32.mrf.mxu0
    %v469 = vadd.f32 %v440, %v468
    %470 = vdwg.mxu0
    %471 = vmatpush.msra.mxu0 %v366
    %472 = vmatpush.msra.mxu0 %v362
    %473 = vmatpush.msra.mxu0 %v358
    %474 = vmatpush.msra.mxu0 %v354
    %475 = vmatpush.msra.mxu0 %v350
    %476 = vmatpush.msra.mxu0 %v346
    %477 = vmatpush.msra.mxu0 %v342
    %478 = vmatpush.msra.mxu0 %v338
    %479 = vmatpush.msra.mxu0 %v334
    %480 = vmatpush.msra.mxu0 %v330
    %481 = vmatpush.msra.mxu0 %v326
    %482 = vmatpush.msra.mxu0 %v322
    %483 = vmatpush.msra.mxu0 %v318
    %484 = vmatpush.msra.mxu0 %v314
    %485 = vmatpush.msra.mxu0 %v310
    %486 = vmatpush.msra.mxu0 %v306
    %487 = vmatmul.f32.gmra.mxu0 %v301
    %v488 = vpop.f32.mrf.mxu0
    %v489 = vadd.f32 0.0, %v488
    %490 = vmatmul.f32.gmra.mxu0 %v302
    %v491 = vpop.f32.mrf.mxu0
    %v492 = vadd.f32 0.0, %v491
    %493 = vmatmul.f32.gmra.mxu0 %v303
    %v494 = vpop.f32.mrf.mxu0
    %v495 = vadd.f32 0.0, %v494
    %496 = vmatmul.f32.gmra.mxu0 %v304
    %v497 = vpop.f32.mrf.mxu0
    %v498 = vadd.f32 0.0, %v497
    %499 = vdwg.mxu0
    %500 = vmatpush.msra.mxu0 0.0
    %501 = vmatpush.msra.mxu0 0.0
    %502 = vmatpush.msra.mxu0 0.0
    %503 = vmatpush.msra.mxu0 0.0
    %504 = vmatpush.msra.mxu0 0.0
    %505 = vmatpush.msra.mxu0 0.0
    %506 = vmatpush.msra.mxu0 0.0
    %507 = vmatpush.msra.mxu0 0.0
    %508 = vmatpush.msra.mxu0 %v398
    %509 = vmatpush.msra.mxu0 %v394
    %510 = vmatpush.msra.mxu0 %v390
    %511 = vmatpush.msra.mxu0 %v386
    %512 = vmatpush.msra.mxu0 %v382
    %513 = vmatpush.msra.mxu0 %v378
    %514 = vmatpush.msra.mxu0 %v374
    %515 = vmatpush.msra.mxu0 %v370
    %516 = vmatmul.f32.gmra.mxu0 %v402
    %v517 = vpop.f32.mrf.mxu0
    %v518 = vadd.f32 %v489, %v517
    %519 = vmatmul.f32.gmra.mxu0 %v405
    %v520 = vpop.f32.mrf.mxu0
    %v521 = vadd.f32 %v492, %v520
    %522 = vmatmul.f32.gmra.mxu0 %v408
    %v523 = vpop.f32.mrf.mxu0
    %v524 = vadd.f32 %v495, %v523
    %525 = vmatmul.f32.gmra.mxu0 %v411
    %v526 = vpop.f32.mrf.mxu0
    %v527 = vadd.f32 %v498, %v526
    %528 = vdwg.mxu0
    %529 = vmatpush.msra.mxu0 %v367
    %530 = vmatpush.msra.mxu0 %v363
    %531 = vmatpush.msra.mxu0 %v359
    %532 = vmatpush.msra.mxu0 %v355
    %533 = vmatpush.msra.mxu0 %v351
    %534 = vmatpush.msra.mxu0 %v347
    %535 = vmatpush.msra.mxu0 %v343
    %536 = vmatpush.msra.mxu0 %v339
    %537 = vmatpush.msra.mxu0 %v335
    %538 = vmatpush.msra.mxu0 %v331
    %539 = vmatpush.msra.mxu0 %v327
    %540 = vmatpush.msra.mxu0 %v323
    %541 = vmatpush.msra.mxu0 %v319
    %542 = vmatpush.msra.mxu0 %v315
    %543 = vmatpush.msra.mxu0 %v311
    %544 = vmatpush.msra.mxu0 %v307
    %545 = vmatmul.f32.gmra.mxu0 %v301
    %v546 = vpop.f32.mrf.mxu0
    %v547 = vadd.f32 0.0, %v546
    %548 = vmatmul.f32.gmra.mxu0 %v302
    %v549 = vpop.f32.mrf.mxu0
    %v550 = vadd.f32 0.0, %v549
    %551 = vmatmul.f32.gmra.mxu0 %v303
    %v552 = vpop.f32.mrf.mxu0
    %v553 = vadd.f32 0.0, %v552
    %554 = vmatmul.f32.gmra.mxu0 %v304
    %v555 = vpop.f32.mrf.mxu0
    %v556 = vadd.f32 0.0, %v555
    %557 = vdwg.mxu0
    %558 = vmatpush.msra.mxu0 0.0
    %559 = vmatpush.msra.mxu0 0.0
    %560 = vmatpush.msra.mxu0 0.0
    %561 = vmatpush.msra.mxu0 0.0
    %562 = vmatpush.msra.mxu0 0.0
    %563 = vmatpush.msra.mxu0 0.0
    %564 = vmatpush.msra.mxu0 0.0
    %565 = vmatpush.msra.mxu0 0.0
    %566 = vmatpush.msra.mxu0 %v399
    %567 = vmatpush.msra.mxu0 %v395
    %568 = vmatpush.msra.mxu0 %v391
    %569 = vmatpush.msra.mxu0 %v387
    %570 = vmatpush.msra.mxu0 %v383
    %571 = vmatpush.msra.mxu0 %v379
    %572 = vmatpush.msra.mxu0 %v375
    %573 = vmatpush.msra.mxu0 %v371
    %574 = vmatmul.f32.gmra.mxu0 %v402
    %v575 = vpop.f32.mrf.mxu0
    %v576 = vadd.f32 %v547, %v575
    %577 = vmatmul.f32.gmra.mxu0 %v405
    %v578 = vpop.f32.mrf.mxu0
    %v579 = vadd.f32 %v550, %v578
    %580 = vmatmul.f32.gmra.mxu0 %v408
    %v581 = vpop.f32.mrf.mxu0
    %v582 = vadd.f32 %v553, %v581
    %583 = vmatmul.f32.gmra.mxu0 %v411
    %v584 = vpop.f32.mrf.mxu0
    %v585 = vadd.f32 %v556, %v584
    %586 = vdwg.mxu0
    %587 = vmatpush.msra.mxu0 %v368
    %588 = vmatpush.msra.mxu0 %v364
    %589 = vmatpush.msra.mxu0 %v360
    %590 = vmatpush.msra.mxu0 %v356
    %591 = vmatpush.msra.mxu0 %v352
    %592 = vmatpush.msra.mxu0 %v348
    %593 = vmatpush.msra.mxu0 %v344
    %594 = vmatpush.msra.mxu0 %v340
    %595 = vmatpush.msra.mxu0 %v336
    %596 = vmatpush.msra.mxu0 %v332
    %597 = vmatpush.msra.mxu0 %v328
    %598 = vmatpush.msra.mxu0 %v324
    %599 = vmatpush.msra.mxu0 %v320
    %600 = vmatpush.msra.mxu0 %v316
    %601 = vmatpush.msra.mxu0 %v312
    %602 = vmatpush.msra.mxu0 %v308
    %603 = vmatmul.f32.gmra.mxu0 %v301
    %v604 = vpop.f32.mrf.mxu0
    %v605 = vadd.f32 0.0, %v604
    %606 = vmatmul.f32.gmra.mxu0 %v302
    %v607 = vpop.f32.mrf.mxu0
    %v608 = vadd.f32 0.0, %v607
    %609 = vmatmul.f32.gmra.mxu0 %v303
    %v610 = vpop.f32.mrf.mxu0
    %v611 = vadd.f32 0.0, %v610
    %612 = vmatmul.f32.gmra.mxu0 %v304
    %v613 = vpop.f32.mrf.mxu0
    %v614 = vadd.f32 0.0, %v613
    %615 = vdwg.mxu0
    %616 = vmatpush.msra.mxu0 0.0
    %617 = vmatpush.msra.mxu0 0.0
    %618 = vmatpush.msra.mxu0 0.0
    %619 = vmatpush.msra.mxu0 0.0
    %620 = vmatpush.msra.mxu0 0.0
    %621 = vmatpush.msra.mxu0 0.0
    %622 = vmatpush.msra.mxu0 0.0
    %623 = vmatpush.msra.mxu0 0.0
    %624 = vmatpush.msra.mxu0 %v400
    %625 = vmatpush.msra.mxu0 %v396
    %626 = vmatpush.msra.mxu0 %v392
    %627 = vmatpush.msra.mxu0 %v388
    %628 = vmatpush.msra.mxu0 %v384
    %629 = vmatpush.msra.mxu0 %v380
    %630 = vmatpush.msra.mxu0 %v376
    %631 = vmatpush.msra.mxu0 %v372
    %632 = vmatmul.f32.gmra.mxu0 %v402
    %v633 = vpop.f32.mrf.mxu0
    %v634 = vadd.f32 %v605, %v633
    %635 = vmatmul.f32.gmra.mxu0 %v405
    %v636 = vpop.f32.mrf.mxu0
    %v637 = vadd.f32 %v608, %v636
    %638 = vmatmul.f32.gmra.mxu0 %v408
    %v639 = vpop.f32.mrf.mxu0
    %v640 = vadd.f32 %v611, %v639
    %641 = vmatmul.f32.gmra.mxu0 %v411
    %v642 = vpop.f32.mrf.mxu0
    %v643 = vadd.f32 %v614, %v642
    %644 = vdwg.mxu0
    %v645 = vadd.f32 %v460, %v463
    %v646 = vadd.f32 %v645, %v466
    %v647 = vadd.f32 %v646, %v469
    %v648 = vrot.slane %v647, 4
    %v649 = vadd.f32 %v647, %v648
    %v650 = vrot.slane %v649, 2
    %v651 = vadd.f32 %v649, %v650
    %v652 = vrot.slane %v651, 1
    %v653 = vadd.f32 %v651, %v652
    %v654 = vadd.f32 %v518, %v521
    %v655 = vadd.f32 %v654, %v524
    %v656 = vadd.f32 %v655, %v527
    %v657 = vrot.slane %v656, 4
    %v658 = vadd.f32 %v656, %v657
    %v659 = vrot.slane %v658, 2
    %v660 = vadd.f32 %v658, %v659
    %v661 = vrot.slane %v660, 1
    %v662 = vadd.f32 %v660, %v661
    %v663 = vadd.f32 %v576, %v579
    %v664 = vadd.f32 %v663, %v582
    %v665 = vadd.f32 %v664, %v585
    %v666 = vrot.slane %v665, 4
    %v667 = vadd.f32 %v665, %v666
    %v668 = vrot.slane %v667, 2
    %v669 = vadd.f32 %v667, %v668
    %v670 = vrot.slane %v669, 1
    %v671 = vadd.f32 %v669, %v670
    %v672 = vadd.f32 %v634, %v637
    %v673 = vadd.f32 %v672, %v640
    %v674 = vadd.f32 %v673, %v643
    %v675 = vrot.slane %v674, 4
    %v676 = vadd.f32 %v674, %v675
    %v677 = vrot.slane %v676, 2
    %v678 = vadd.f32 %v676, %v677
    %v679 = vrot.slane %v678, 1
    %v680 = vadd.f32 %v678, %v679
    %v681 = vmul.f32 %v460, %v460
    %v682 = vmul.f32 %v518, %v518
    %v683 = vmul.f32 %v576, %v576
    %v684 = vmul.f32 %v634, %v634
    %v685 = vmul.f32 %v463, %v463
    %v686 = vmul.f32 %v521, %v521
    %v687 = vmul.f32 %v579, %v579
    %v688 = vmul.f32 %v637, %v637
    %v689 = vmul.f32 %v466, %v466
    %v690 = vmul.f32 %v524, %v524
    %v691 = vmul.f32 %v582, %v582
    %v692 = vmul.f32 %v640, %v640
    %v693 = vmul.f32 %v469, %v469
    %v694 = vmul.f32 %v527, %v527
    %v695 = vmul.f32 %v585, %v585
    %v696 = vmul.f32 %v643, %v643
    %v697 = vadd.f32 %v681, %v685
    %v698 = vadd.f32 %v697, %v689
    %v699 = vadd.f32 %v698, %v693
    %v700 = vrot.slane %v699, 4
    %v701 = vadd.f32 %v699, %v700
    %v702 = vrot.slane %v701, 2
    %v703 = vadd.f32 %v701, %v702
    %v704 = vrot.slane %v703, 1
    %v705 = vadd.f32 %v703, %v704
    %v706 = vadd.f32 %v682, %v686
    %v707 = vadd.f32 %v706, %v690
    %v708 = vadd.f32 %v707, %v694
    %v709 = vrot.slane %v708, 4
    %v710 = vadd.f32 %v708, %v709
    %v711 = vrot.slane %v710, 2
    %v712 = vadd.f32 %v710, %v711
    %v713 = vrot.slane %v712, 1
    %v714 = vadd.f32 %v712, %v713
    %v715 = vadd.f32 %v683, %v687
    %v716 = vadd.f32 %v715, %v691
    %v717 = vadd.f32 %v716, %v695
    %v718 = vrot.slane %v717, 4
    %v719 = vadd.f32 %v717, %v718
    %v720 = vrot.slane %v719, 2
    %v721 = vadd.f32 %v719, %v720
    %v722 = vrot.slane %v721, 1
    %v723 = vadd.f32 %v721, %v722
    %v724 = vadd.f32 %v684, %v688
    %v725 = vadd.f32 %v724, %v692
    %v726 = vadd.f32 %v725, %v696
    %v727 = vrot.slane %v726, 4
    %v728 = vadd.f32 %v726, %v727
    %v729 = vrot.slane %v728, 2
    %v730 = vadd.f32 %v728, %v729
    %v731 = vrot.slane %v730, 1
    %v732 = vadd.f32 %v730, %v731
    %v733 = vsel %vm89, %v653, %v705
    %v734 = vsel %vm89, %v662, %v714
    %v735 = vsel %vm89, %v671, %v723
    %v736 = vsel %vm89, %v680, %v732
    %v737 = vld [vmem:[%s7] sm:$0xff]
    %v738 = vld [vmem:[%s7 + $0x8] sm:$0xff]
    %v739 = vld [vmem:[%s7 + $0x10] sm:$0xff]
    %v740 = vld [vmem:[%s7 + $0x18] sm:$0xff]
    %v741 = vld [vmem:[%s7 + $0x20] sm:$0xff]
    %v742 = vld [vmem:[%s7 + $0x28] sm:$0xff]
    %v743 = vld [vmem:[%s7 + $0x30] sm:$0xff]
    %v744 = vld [vmem:[%s7 + $0x38] sm:$0xff]
    %v745 = vld [vmem:[%s7 + $0x40] sm:$0xff]
    %v746 = vld [vmem:[%s7 + $0x48] sm:$0xff]
    %v747 = vld [vmem:[%s7 + $0x50] sm:$0xff]
    %v748 = vld [vmem:[%s7 + $0x58] sm:$0xff]
    %v749 = vld [vmem:[%s7 + $0x60] sm:$0xff]
    %v750 = vld [vmem:[%s7 + $0x68] sm:$0xff]
    %v751 = vld [vmem:[%s7 + $0x70] sm:$0xff]
    %v752 = vld [vmem:[%s7 + $0x78] sm:$0xff]
    %v753 = vld [vmem:[%s7 + $0x80] sm:$0xff]
    %v754 = vld [vmem:[%s7 + $0x88] sm:$0xff]
    %v755 = vld [vmem:[%s7 + $0x90] sm:$0xff]
    %v756 = vld [vmem:[%s7 + $0x98] sm:$0xff]
    %v757 = vld [vmem:[%s7 + $0xa0] sm:$0xff]
    %v758 = vld [vmem:[%s7 + $0xa8] sm:$0xff]
    %v759 = vld [vmem:[%s7 + $0xb0] sm:$0xff]
    %v760 = vld [vmem:[%s7 + $0xb8] sm:$0xff]
    %v761 = vld [vmem:[%s7 + $0xc0] sm:$0xff]
    %v762 = vld [vmem:[%s7 + $0xc8] sm:$0xff]
    %v763 = vld [vmem:[%s7 + $0xd0] sm:$0xff]
    %v764 = vld [vmem:[%s7 + $0xd8] sm:$0xff]
    %v765 = vld [vmem:[%s7 + $0xe0] sm:$0xff]
    %v766 = vld [vmem:[%s7 + $0xe8] sm:$0xff]
    %v767 = vld [vmem:[%s7 + $0xf0] sm:$0xff]
    %v768 = vld [vmem:[%s7 + $0xf8] sm:$0xff]
    %v769 = vld [vmem:[%s7 + $0x100] sm:$0xff]
    %v770 = vld [vmem:[%s7 + $0x108] sm:$0xff]
    %v771 = vld [vmem:[%s7 + $0x110] sm:$0xff]
    %v772 = vld [vmem:[%s7 + $0x118] sm:$0xff]
    %v773 = vld [vmem:[%s7 + $0x120] sm:$0xff]
    %v774 = vld [vmem:[%s7 + $0x128] sm:$0xff]
    %v775 = vld [vmem:[%s7 + $0x130] sm:$0xff]
    %v776 = vld [vmem:[%s7 + $0x138] sm:$0xff]
    %v777 = vld [vmem:[%s7 + $0x140] sm:$0xff]
    %v778 = vld [vmem:[%s7 + $0x148] sm:$0xff]
    %v779 = vld [vmem:[%s7 + $0x150] sm:$0xff]
    %v780 = vld [vmem:[%s7 + $0x158] sm:$0xff]
    %v781 = vld [vmem:[%s7 + $0x160] sm:$0xff]
    %v782 = vld [vmem:[%s7 + $0x168] sm:$0xff]
    %v783 = vld [vmem:[%s7 + $0x170] sm:$0xff]
    %v784 = vld [vmem:[%s7 + $0x178] sm:$0xff]
    %v785 = vld [vmem:[%s7 + $0x180] sm:$0xff]
    %v786 = vld [vmem:[%s7 + $0x188] sm:$0xff]
    %v787 = vld [vmem:[%s7 + $0x190] sm:$0xff]
    %v788 = vld [vmem:[%s7 + $0x198] sm:$0xff]
    %v789 = vld [vmem:[%s7 + $0x1a0] sm:$0xff]
    %v790 = vld [vmem:[%s7 + $0x1a8] sm:$0xff]
    %v791 = vld [vmem:[%s7 + $0x1b0] sm:$0xff]
    %v792 = vld [vmem:[%s7 + $0x1b8] sm:$0xff]
    %v793 = vld [vmem:[%s7 + $0x1c0] sm:$0xff]
    %v794 = vld [vmem:[%s7 + $0x1c8] sm:$0xff]
    %v795 = vld [vmem:[%s7 + $0x1d0] sm:$0xff]
    %v796 = vld [vmem:[%s7 + $0x1d8] sm:$0xff]
    %v797 = vld [vmem:[%s7 + $0x1e0] sm:$0xff]
    %v798 = vld [vmem:[%s7 + $0x1e8] sm:$0xff]
    %v799 = vld [vmem:[%s7 + $0x1f0] sm:$0xff]
    %v800 = vld [vmem:[%s7 + $0x1f8] sm:$0xff]
    %801 = vmatpush.msra.mxu0 %v752
    %802 = vmatpush.msra.mxu0 %v751
    %803 = vmatpush.msra.mxu0 %v750
    %804 = vmatpush.msra.mxu0 %v749
    %805 = vmatpush.msra.mxu0 %v748
    %806 = vmatpush.msra.mxu0 %v747
    %807 = vmatpush.msra.mxu0 %v746
    %808 = vmatpush.msra.mxu0 %v745
    %809 = vmatpush.msra.mxu0 %v744
    %810 = vmatpush.msra.mxu0 %v743
    %811 = vmatpush.msra.mxu0 %v742
    %812 = vmatpush.msra.mxu0 %v741
    %813 = vmatpush.msra.mxu0 %v740
    %814 = vmatpush.msra.mxu0 %v739
    %815 = vmatpush.msra.mxu0 %v738
    %816 = vmatpush.msra.mxu0 %v737
    %817 = vmatmul.f32.gmra.mxu0 %v733
    %v818 = vpop.f32.mrf.mxu0
    %v819 = vadd.f32 0.0, %v818
    %820 = vdwg.mxu0
    %821 = vmatpush.msra.mxu0 %v768
    %822 = vmatpush.msra.mxu0 %v767
    %823 = vmatpush.msra.mxu0 %v766
    %824 = vmatpush.msra.mxu0 %v765
    %825 = vmatpush.msra.mxu0 %v764
    %826 = vmatpush.msra.mxu0 %v763
    %827 = vmatpush.msra.mxu0 %v762
    %828 = vmatpush.msra.mxu0 %v761
    %829 = vmatpush.msra.mxu0 %v760
    %830 = vmatpush.msra.mxu0 %v759
    %831 = vmatpush.msra.mxu0 %v758
    %832 = vmatpush.msra.mxu0 %v757
    %833 = vmatpush.msra.mxu0 %v756
    %834 = vmatpush.msra.mxu0 %v755
    %835 = vmatpush.msra.mxu0 %v754
    %836 = vmatpush.msra.mxu0 %v753
    %837 = vmatmul.f32.gmra.mxu0 %v734
    %v838 = vpop.f32.mrf.mxu0
    %v839 = vadd.f32 %v819, %v838
    %840 = vdwg.mxu0
    %841 = vmatpush.msra.mxu0 %v784
    %842 = vmatpush.msra.mxu0 %v783
    %843 = vmatpush.msra.mxu0 %v782
    %844 = vmatpush.msra.mxu0 %v781
    %845 = vmatpush.msra.mxu0 %v780
    %846 = vmatpush.msra.mxu0 %v779
    %847 = vmatpush.msra.mxu0 %v778
    %848 = vmatpush.msra.mxu0 %v777
    %849 = vmatpush.msra.mxu0 %v776
    %850 = vmatpush.msra.mxu0 %v775
    %851 = vmatpush.msra.mxu0 %v774
    %852 = vmatpush.msra.mxu0 %v773
    %853 = vmatpush.msra.mxu0 %v772
    %854 = vmatpush.msra.mxu0 %v771
    %855 = vmatpush.msra.mxu0 %v770
    %856 = vmatpush.msra.mxu0 %v769
    %857 = vmatmul.f32.gmra.mxu0 %v735
    %v858 = vpop.f32.mrf.mxu0
    %v859 = vadd.f32 %v839, %v858
    %860 = vdwg.mxu0
    %861 = vmatpush.msra.mxu0 %v800
    %862 = vmatpush.msra.mxu0 %v799
    %863 = vmatpush.msra.mxu0 %v798
    %864 = vmatpush.msra.mxu0 %v797
    %865 = vmatpush.msra.mxu0 %v796
    %866 = vmatpush.msra.mxu0 %v795
    %867 = vmatpush.msra.mxu0 %v794
    %868 = vmatpush.msra.mxu0 %v793
    %869 = vmatpush.msra.mxu0 %v792
    %870 = vmatpush.msra.mxu0 %v791
    %871 = vmatpush.msra.mxu0 %v790
    %872 = vmatpush.msra.mxu0 %v789
    %873 = vmatpush.msra.mxu0 %v788
    %874 = vmatpush.msra.mxu0 %v787
    %875 = vmatpush.msra.mxu0 %v786
    %876 = vmatpush.msra.mxu0 %v785
    %877 = vmatmul.f32.gmra.mxu0 %v736
    %v878 = vpop.f32.mrf.mxu0
    %v879 = vadd.f32 %v859, %v878
    %880 = vdwg.mxu0
    %v881 = vmul.f32 %v879, %v879
    %v883 = vrot.slane %v881, 7
    %v885 = vsub.f32 %v879, %v883
    %v886 = vadd.f32 %v885, 1e-05
    %v887 = vrsqrt.pop %v886
    %v888 = vmul.f32 %v887, %v886
    %v889 = vmul.f32 %v888, %v887
    %v890 = vmul.f32 0.5, %v889
    %v891 = vsub.f32 1.5, %v890
    %v892 = vmul.f32 %v887, %v891
    %vm893 = vweird.f32 %v886
    %vm894 = vweird.f32 %v887
    %vm895 = vmor %vm893, %vm894
    %v896 = vsel %vm895, %v887, %v892
    %v897 = vsub.f32 0.0, %v879
    %v899 = vrot.slane %v896, 1
    %v901 = vmul.f32 %v897, %v899
    %v903 = vrot.slane %v901, 7
    %v905 = vsel %vm89, %v899, %v903
    %v906 = vld [vmem:[%s8] sm:$0xff]
    %v907 = vld [vmem:[%s8 + $0x8] sm:$0xff]
    %v908 = vld [vmem:[%s8 + $0x10] sm:$0xff]
    %v909 = vld [vmem:[%s8 + $0x18] sm:$0xff]
    %vm910 = vcmask 64512
    %v912 = vsel %vm910, %v905, 0
    %914 = vmatpush.msra.mxu0 0.0
    %915 = vmatpush.msra.mxu0 0.0
    %916 = vmatpush.msra.mxu0 0.0
    %917 = vmatpush.msra.mxu0 0.0
    %918 = vmatpush.msra.mxu0 0.0
    %919 = vmatpush.msra.mxu0 0.0
    %920 = vmatpush.msra.mxu0 0.0
    %921 = vmatpush.msra.mxu0 0.0
    %922 = vmatpush.msra.mxu0 0.0
    %923 = vmatpush.msra.mxu0 0.0
    %924 = vmatpush.msra.mxu0 0.0
    %925 = vmatpush.msra.mxu0 0.0
    %926 = vmatpush.msra.mxu0 0.0
    %927 = vmatpush.msra.mxu0 0.0
    %928 = vmatpush.msra.mxu0 0.0
    %929 = vmatpush.msra.mxu0 %v906
    %930 = vmatmul.f32.gmra.mxu0 %v912
    %v931 = vpop.f32.mrf.mxu0
    %v932 = vadd.f32 0.0, %v931
    %933 = vdwg.mxu0
    %934 = vmatpush.msra.mxu0 0.0
    %935 = vmatpush.msra.mxu0 0.0
    %936 = vmatpush.msra.mxu0 0.0
    %937 = vmatpush.msra.mxu0 0.0
    %938 = vmatpush.msra.mxu0 0.0
    %939 = vmatpush.msra.mxu0 0.0
    %940 = vmatpush.msra.mxu0 0.0
    %941 = vmatpush.msra.mxu0 0.0
    %942 = vmatpush.msra.mxu0 0.0
    %943 = vmatpush.msra.mxu0 0.0
    %944 = vmatpush.msra.mxu0 0.0
    %945 = vmatpush.msra.mxu0 0.0
    %946 = vmatpush.msra.mxu0 0.0
    %947 = vmatpush.msra.mxu0 0.0
    %948 = vmatpush.msra.mxu0 0.0
    %949 = vmatpush.msra.mxu0 %v907
    %950 = vmatmul.f32.gmra.mxu0 %v912
    %v951 = vpop.f32.mrf.mxu0
    %v952 = vadd.f32 0.0, %v951
    %953 = vdwg.mxu0
    %954 = vmatpush.msra.mxu0 0.0
    %955 = vmatpush.msra.mxu0 0.0
    %956 = vmatpush.msra.mxu0 0.0
    %957 = vmatpush.msra.mxu0 0.0
    %958 = vmatpush.msra.mxu0 0.0
    %959 = vmatpush.msra.mxu0 0.0
    %960 = vmatpush.msra.mxu0 0.0
    %961 = vmatpush.msra.mxu0 0.0
    %962 = vmatpush.msra.mxu0 0.0
    %963 = vmatpush.msra.mxu0 0.0
    %964 = vmatpush.msra.mxu0 0.0
    %965 = vmatpush.msra.mxu0 0.0
    %966 = vmatpush.msra.mxu0 0.0
    %967 = vmatpush.msra.mxu0 0.0
    %968 = vmatpush.msra.mxu0 0.0
    %969 = vmatpush.msra.mxu0 %v908
    %970 = vmatmul.f32.gmra.mxu0 %v912
    %v971 = vpop.f32.mrf.mxu0
    %v972 = vadd.f32 0.0, %v971
    %973 = vdwg.mxu0
    %974 = vmatpush.msra.mxu0 0.0
    %975 = vmatpush.msra.mxu0 0.0
    %976 = vmatpush.msra.mxu0 0.0
    %977 = vmatpush.msra.mxu0 0.0
    %978 = vmatpush.msra.mxu0 0.0
    %979 = vmatpush.msra.mxu0 0.0
    %980 = vmatpush.msra.mxu0 0.0
    %981 = vmatpush.msra.mxu0 0.0
    %982 = vmatpush.msra.mxu0 0.0
    %983 = vmatpush.msra.mxu0 0.0
    %984 = vmatpush.msra.mxu0 0.0
    %985 = vmatpush.msra.mxu0 0.0
    %986 = vmatpush.msra.mxu0 0.0
    %987 = vmatpush.msra.mxu0 0.0
    %988 = vmatpush.msra.mxu0 0.0
    %989 = vmatpush.msra.mxu0 %v909
    %990 = vmatmul.f32.gmra.mxu0 %v912
    %v991 = vpop.f32.mrf.mxu0
    %v992 = vadd.f32 0.0, %v991
    %993 = vdwg.mxu0
    %v994 = vperm.slane %v932, 0
    %v995 = vperm.slane %v952, 0
    %v996 = vperm.slane %v972, 0
    %v997 = vperm.slane %v992, 0
    %v998 = vmul.f32 %v460, %v994
    %v999 = vmul.f32 %v518, %v995
    %v1000 = vmul.f32 %v576, %v996
    %v1001 = vmul.f32 %v634, %v997
    %v1002 = vmul.f32 %v463, %v994
    %v1003 = vmul.f32 %v521, %v995
    %v1004 = vmul.f32 %v579, %v996
    %v1005 = vmul.f32 %v637, %v997
    %v1006 = vmul.f32 %v466, %v994
    %v1007 = vmul.f32 %v524, %v995
    %v1008 = vmul.f32 %v582, %v996
    %v1009 = vmul.f32 %v640, %v997
    %v1010 = vmul.f32 %v469, %v994
    %v1011 = vmul.f32 %v527, %v995
    %v1012 = vmul.f32 %v585, %v996
    %v1013 = vmul.f32 %v643, %v997
    %v1014 = vperm.slane %v932, 1
    %v1015 = vperm.slane %v952, 1
    %v1016 = vperm.slane %v972, 1
    %v1017 = vperm.slane %v992, 1
    %v1018 = vadd.f32 %v998, %v1014
    %v1019 = vadd.f32 %v999, %v1015
    %v1020 = vadd.f32 %v1000, %v1016
    %v1021 = vadd.f32 %v1001, %v1017
    %v1022 = vadd.f32 %v1002, %v1014
    %v1023 = vadd.f32 %v1003, %v1015
    %v1024 = vadd.f32 %v1004, %v1016
    %v1025 = vadd.f32 %v1005, %v1017
    %v1026 = vadd.f32 %v1006, %v1014
    %v1027 = vadd.f32 %v1007, %v1015
    %v1028 = vadd.f32 %v1008, %v1016
    %v1029 = vadd.f32 %v1009, %v1017
    %v1030 = vadd.f32 %v1010, %v1014
    %v1031 = vadd.f32 %v1011, %v1015
    %v1032 = vadd.f32 %v1012, %v1016
    %v1033 = vadd.f32 %v1013, %v1017
    %v1034 = vld [vmem:[%s9] sm:$0xf]
    %v1036 = vperm.slane %v1034, 0
    %v1037 = vperm.slane %v1034, 1
    %v1038 = vperm.slane %v1034, 2
    %v1039 = vperm.slane %v1034, 3
    %v1044 = vadd.f32 %v1018, %v1036
    %v1045 = vadd.f32 %v1019, %v1037
    %v1046 = vadd.f32 %v1020, %v1038
    %v1047 = vadd.f32 %v1021, %v1039
    %v1048 = vadd.f32 %v1022, %v1036
    %v1049 = vadd.f32 %v1023, %v1037
    %v1050 = vadd.f32 %v1024, %v1038
    %v1051 = vadd.f32 %v1025, %v1039
    %v1052 = vadd.f32 %v1026, %v1036
    %v1053 = vadd.f32 %v1027, %v1037
    %v1054 = vadd.f32 %v1028, %v1038
    %v1055 = vadd.f32 %v1029, %v1039
    %v1056 = vadd.f32 %v1030, %v1036
    %v1057 = vadd.f32 %v1031, %v1037
    %v1058 = vadd.f32 %v1032, %v1038
    %v1059 = vadd.f32 %v1033, %v1039
    %v1060 = vmax.f32 %v1044, 0.0
    %v1061 = vmax.f32 %v1045, 0.0
    %v1062 = vmax.f32 %v1046, 0.0
    %v1063 = vmax.f32 %v1047, 0.0
    %v1064 = vmax.f32 %v1048, 0.0
    %v1065 = vmax.f32 %v1049, 0.0
    %v1066 = vmax.f32 %v1050, 0.0
    %v1067 = vmax.f32 %v1051, 0.0
    %v1068 = vmax.f32 %v1052, 0.0
    %v1069 = vmax.f32 %v1053, 0.0
    %v1070 = vmax.f32 %v1054, 0.0
    %v1071 = vmax.f32 %v1055, 0.0
    %v1072 = vmax.f32 %v1056, 0.0
    %v1073 = vmax.f32 %v1057, 0.0
    %v1074 = vmax.f32 %v1058, 0.0
    %v1075 = vmax.f32 %v1059, 0.0
    %v1076 = vrot.slane %v1062, 7
    %v1077 = vrot.slane %v1063, 7
    %v1078 = vrot.slane %v1066, 7
    %v1079 = vrot.slane %v1067, 7
    %v1080 = vrot.slane %v1070, 7
    %v1081 = vrot.slane %v1071, 7
    %v1082 = vrot.slane %v1074, 7
    %v1083 = vrot.slane %v1075, 7
    %v1084 = vsel %vm259, %v1080, %v1082
    %v1085 = vsel %vm259, %v1081, %v1083
    %v1086 = vsel %vm259, %v1078, %v1080
    %v1087 = vsel %vm259, %v1079, %v1081
    %v1088 = vsel %vm259, %v1076, %v1078
    %v1089 = vsel %vm259, %v1077, %v1079
    %v1090 = vsel %vm259, %v1082, %v1076
    %v1091 = vsel %vm259, %v1083, %v1077
    %v1092 = vsel %vm251, 0.0, %v1090
    %v1093 = vsel %vm251, 0.0, %v1091
    %v1094 = vsel %vm252, 0.0, %v1088
    %v1095 = vsel %vm252, 0.0, %v1089
    %v1096 = vsel %vm253, 0.0, %v1086
    %v1097 = vsel %vm253, 0.0, %v1087
    %v1098 = vsel %vm254, 0.0, %v1084
    %v1099 = vsel %vm254, 0.0, %v1085
    %v1100 = vld [vmem:[#allocation2] sm:$0xff]
    %v1101 = vld [vmem:[#allocation2 + $0x8] sm:$0xff]
    %v1102 = vld [vmem:[#allocation2 + $0x10] sm:$0xff]
    %v1103 = vld [vmem:[#allocation2 + $0x18] sm:$0xff]
    %v1104 = vld [vmem:[#allocation2 + $0x20] sm:$0xff]
    %v1105 = vld [vmem:[#allocation2 + $0x28] sm:$0xff]
    %v1106 = vld [vmem:[#allocation2 + $0x30] sm:$0xff]
    %v1107 = vld [vmem:[#allocation2 + $0x38] sm:$0xff]
    %v1108 = vld [vmem:[#allocation2 + $0x40] sm:$0xff]
    %v1109 = vld [vmem:[#allocation2 + $0x48] sm:$0xff]
    %v1110 = vld [vmem:[#allocation2 + $0x50] sm:$0xff]
    %v1111 = vld [vmem:[#allocation2 + $0x58] sm:$0xff]
    %v1112 = vld [vmem:[#allocation2 + $0x60] sm:$0xff]
    %v1113 = vld [vmem:[#allocation2 + $0x68] sm:$0xff]
    %v1114 = vld [vmem:[#allocation2 + $0x70] sm:$0xff]
    %v1115 = vld [vmem:[#allocation2 + $0x78] sm:$0xff]
    %v1116 = vld [vmem:[#allocation2 + $0x80] sm:$0xff]
    %v1117 = vld [vmem:[#allocation2 + $0x88] sm:$0xff]
    %v1118 = vld [vmem:[#allocation2 + $0x90] sm:$0xff]
    %v1119 = vld [vmem:[#allocation2 + $0x98] sm:$0xff]
    %v1120 = vld [vmem:[#allocation2 + $0xa0] sm:$0xff]
    %v1121 = vld [vmem:[#allocation2 + $0xa8] sm:$0xff]
    %v1122 = vld [vmem:[#allocation2 + $0xb0] sm:$0xff]
    %v1123 = vld [vmem:[#allocation2 + $0xb8] sm:$0xff]
    %v1124 = vld [vmem:[#allocation2 + $0xc0] sm:$0xff]
    %v1125 = vld [vmem:[#allocation2 + $0xc8] sm:$0xff]
    %v1126 = vld [vmem:[#allocation2 + $0xd0] sm:$0xff]
    %v1127 = vld [vmem:[#allocation2 + $0xd8] sm:$0xff]
    %v1128 = vld [vmem:[#allocation2 + $0xe0] sm:$0xff]
    %v1129 = vld [vmem:[#allocation2 + $0xe8] sm:$0xff]
    %v1130 = vld [vmem:[#allocation2 + $0xf0] sm:$0xff]
    %v1131 = vld [vmem:[#allocation2 + $0xf8] sm:$0xff]
    %v1132 = vld [vmem:[#allocation2 + $0x100] sm:$0xff]
    %v1133 = vld [vmem:[#allocation2 + $0x108] sm:$0xff]
    %v1134 = vld [vmem:[#allocation2 + $0x110] sm:$0xff]
    %v1135 = vld [vmem:[#allocation2 + $0x118] sm:$0xff]
    %v1136 = vld [vmem:[#allocation2 + $0x120] sm:$0xff]
    %v1137 = vld [vmem:[#allocation2 + $0x128] sm:$0xff]
    %v1138 = vld [vmem:[#allocation2 + $0x130] sm:$0xff]
    %v1139 = vld [vmem:[#allocation2 + $0x138] sm:$0xff]
    %v1140 = vld [vmem:[#allocation2 + $0x140] sm:$0xff]
    %v1141 = vld [vmem:[#allocation2 + $0x148] sm:$0xff]
    %v1142 = vld [vmem:[#allocation2 + $0x150] sm:$0xff]
    %v1143 = vld [vmem:[#allocation2 + $0x158] sm:$0xff]
    %v1144 = vld [vmem:[#allocation2 + $0x160] sm:$0xff]
    %v1145 = vld [vmem:[#allocation2 + $0x168] sm:$0xff]
    %v1146 = vld [vmem:[#allocation2 + $0x170] sm:$0xff]
    %v1147 = vld [vmem:[#allocation2 + $0x178] sm:$0xff]
    %v1148 = vld [vmem:[#allocation2 + $0x180] sm:$0xff]
    %v1149 = vld [vmem:[#allocation2 + $0x188] sm:$0xff]
    %v1150 = vld [vmem:[#allocation2 + $0x190] sm:$0xff]
    %v1151 = vld [vmem:[#allocation2 + $0x198] sm:$0xff]
    %v1152 = vld [vmem:[#allocation2 + $0x1a0] sm:$0xff]
    %v1153 = vld [vmem:[#allocation2 + $0x1a8] sm:$0xff]
    %v1154 = vld [vmem:[#allocation2 + $0x1b0] sm:$0xff]
    %v1155 = vld [vmem:[#allocation2 + $0x1b8] sm:$0xff]
    %v1156 = vld [vmem:[#allocation2 + $0x1c0] sm:$0xff]
    %v1157 = vld [vmem:[#allocation2 + $0x1c8] sm:$0xff]
    %v1158 = vld [vmem:[#allocation2 + $0x1d0] sm:$0xff]
    %v1159 = vld [vmem:[#allocation2 + $0x1d8] sm:$0xff]
    %v1160 = vld [vmem:[#allocation2 + $0x1e0] sm:$0xff]
    %v1161 = vld [vmem:[#allocation2 + $0x1e8] sm:$0xff]
    %v1162 = vld [vmem:[#allocation2 + $0x1f0] sm:$0xff]
    %v1163 = vld [vmem:[#allocation2 + $0x1f8] sm:$0xff]
    %v1164 = vld [vmem:[#allocation2 + $0x200] sm:$0xff]
    %v1165 = vld [vmem:[#allocation2 + $0x208] sm:$0xff]
    %v1166 = vld [vmem:[#allocation2 + $0x210] sm:$0xff]
    %v1167 = vld [vmem:[#allocation2 + $0x218] sm:$0xff]
    %v1168 = vld [vmem:[#allocation2 + $0x220] sm:$0xff]
    %v1169 = vld [vmem:[#allocation2 + $0x228] sm:$0xff]
    %v1170 = vld [vmem:[#allocation2 + $0x230] sm:$0xff]
    %v1171 = vld [vmem:[#allocation2 + $0x238] sm:$0xff]
    %v1172 = vld [vmem:[#allocation2 + $0x240] sm:$0xff]
    %v1173 = vld [vmem:[#allocation2 + $0x248] sm:$0xff]
    %v1174 = vld [vmem:[#allocation2 + $0x250] sm:$0xff]
    %v1175 = vld [vmem:[#allocation2 + $0x258] sm:$0xff]
    %v1176 = vld [vmem:[#allocation2 + $0x260] sm:$0xff]
    %v1177 = vld [vmem:[#allocation2 + $0x268] sm:$0xff]
    %v1178 = vld [vmem:[#allocation2 + $0x270] sm:$0xff]
    %v1179 = vld [vmem:[#allocation2 + $0x278] sm:$0xff]
    %v1180 = vld [vmem:[#allocation2 + $0x280] sm:$0xff]
    %v1181 = vld [vmem:[#allocation2 + $0x288] sm:$0xff]
    %v1182 = vld [vmem:[#allocation2 + $0x290] sm:$0xff]
    %v1183 = vld [vmem:[#allocation2 + $0x298] sm:$0xff]
    %v1184 = vld [vmem:[#allocation2 + $0x2a0] sm:$0xff]
    %v1185 = vld [vmem:[#allocation2 + $0x2a8] sm:$0xff]
    %v1186 = vld [vmem:[#allocation2 + $0x2b0] sm:$0xff]
    %v1187 = vld [vmem:[#allocation2 + $0x2b8] sm:$0xff]
    %v1188 = vld [vmem:[#allocation2 + $0x2c0] sm:$0xff]
    %v1189 = vld [vmem:[#allocation2 + $0x2c8] sm:$0xff]
    %v1190 = vld [vmem:[#allocation2 + $0x2d0] sm:$0xff]
    %v1191 = vld [vmem:[#allocation2 + $0x2d8] sm:$0xff]
    %v1192 = vld [vmem:[#allocation2 + $0x2e0] sm:$0xff]
    %v1193 = vld [vmem:[#allocation2 + $0x2e8] sm:$0xff]
    %v1194 = vld [vmem:[#allocation2 + $0x2f0] sm:$0xff]
    %v1195 = vld [vmem:[#allocation2 + $0x2f8] sm:$0xff]
    %v1196 = vld [vmem:[#allocation2 + $0x300] sm:$0xff]
    %v1197 = vld [vmem:[#allocation2 + $0x308] sm:$0xff]
    %v1198 = vld [vmem:[#allocation2 + $0x310] sm:$0xff]
    %v1199 = vld [vmem:[#allocation2 + $0x318] sm:$0xff]
    %v1200 = vld [vmem:[#allocation2 + $0x320] sm:$0xff]
    %v1201 = vld [vmem:[#allocation2 + $0x328] sm:$0xff]
    %v1202 = vld [vmem:[#allocation2 + $0x330] sm:$0xff]
    %v1203 = vld [vmem:[#allocation2 + $0x338] sm:$0xff]
    %v1204 = vld [vmem:[#allocation2 + $0x340] sm:$0xff]
    %v1205 = vld [vmem:[#allocation2 + $0x348] sm:$0xff]
    %v1206 = vld [vmem:[#allocation2 + $0x350] sm:$0xff]
    %v1207 = vld [vmem:[#allocation2 + $0x358] sm:$0xff]
    %v1208 = vld [vmem:[#allocation2 + $0x360] sm:$0xff]
    %v1209 = vld [vmem:[#allocation2 + $0x368] sm:$0xff]
    %v1210 = vld [vmem:[#allocation2 + $0x370] sm:$0xff]
    %v1211 = vld [vmem:[#allocation2 + $0x378] sm:$0xff]
    %v1212 = vld [vmem:[#allocation2 + $0x380] sm:$0xff]
    %v1213 = vld [vmem:[#allocation2 + $0x388] sm:$0xff]
    %v1214 = vld [vmem:[#allocation2 + $0x390] sm:$0xff]
    %v1215 = vld [vmem:[#allocation2 + $0x398] sm:$0xff]
    %v1216 = vld [vmem:[#allocation2 + $0x3a0] sm:$0xff]
    %v1217 = vld [vmem:[#allocation2 + $0x3a8] sm:$0xff]
    %v1218 = vld [vmem:[#allocation2 + $0x3b0] sm:$0xff]
    %v1219 = vld [vmem:[#allocation2 + $0x3b8] sm:$0xff]
    %v1220 = vld [vmem:[#allocation2 + $0x3c0] sm:$0xff]
    %v1221 = vld [vmem:[#allocation2 + $0x3c8] sm:$0xff]
    %v1222 = vld [vmem:[#allocation2 + $0x3d0] sm:$0xff]
    %v1223 = vld [vmem:[#allocation2 + $0x3d8] sm:$0xff]
    %v1224 = vld [vmem:[#allocation2 + $0x3e0] sm:$0xff]
    %v1225 = vld [vmem:[#allocation2 + $0x3e8] sm:$0xff]
    %v1226 = vld [vmem:[#allocation2 + $0x3f0] sm:$0xff]
    %v1227 = vld [vmem:[#allocation2 + $0x3f8] sm:$0xff]
    %v1228 = vld [vmem:[#allocation2 + $0x400] sm:$0xff]
    %v1229 = vld [vmem:[#allocation2 + $0x408] sm:$0xff]
    %v1230 = vld [vmem:[#allocation2 + $0x410] sm:$0xff]
    %v1231 = vld [vmem:[#allocation2 + $0x418] sm:$0xff]
    %v1232 = vld [vmem:[#allocation2 + $0x420] sm:$0xff]
    %v1233 = vld [vmem:[#allocation2 + $0x428] sm:$0xff]
    %v1234 = vld [vmem:[#allocation2 + $0x430] sm:$0xff]
    %v1235 = vld [vmem:[#allocation2 + $0x438] sm:$0xff]
    %v1236 = vld [vmem:[#allocation2 + $0x440] sm:$0xff]
    %v1237 = vld [vmem:[#allocation2 + $0x448] sm:$0xff]
    %v1238 = vld [vmem:[#allocation2 + $0x450] sm:$0xff]
    %v1239 = vld [vmem:[#allocation2 + $0x458] sm:$0xff]
    %v1240 = vld [vmem:[#allocation2 + $0x460] sm:$0xff]
    %v1241 = vld [vmem:[#allocation2 + $0x468] sm:$0xff]
    %v1242 = vld [vmem:[#allocation2 + $0x470] sm:$0xff]
    %v1243 = vld [vmem:[#allocation2 + $0x478] sm:$0xff]
    %v1244 = vld [vmem:[#allocation2 + $0x480] sm:$0xff]
    %v1245 = vld [vmem:[#allocation2 + $0x488] sm:$0xff]
    %v1246 = vld [vmem:[#allocation2 + $0x490] sm:$0xff]
    %v1247 = vld [vmem:[#allocation2 + $0x498] sm:$0xff]
    %v1248 = vld [vmem:[#allocation2 + $0x4a0] sm:$0xff]
    %v1249 = vld [vmem:[#allocation2 + $0x4a8] sm:$0xff]
    %v1250 = vld [vmem:[#allocation2 + $0x4b0] sm:$0xff]
    %v1251 = vld [vmem:[#allocation2 + $0x4b8] sm:$0xff]
    %v1252 = vld [vmem:[#allocation2 + $0x4c0] sm:$0xff]
    %v1253 = vld [vmem:[#allocation2 + $0x4c8] sm:$0xff]
    %v1254 = vld [vmem:[#allocation2 + $0x4d0] sm:$0xff]
    %v1255 = vld [vmem:[#allocation2 + $0x4d8] sm:$0xff]
    %v1256 = vld [vmem:[#allocation2 + $0x4e0] sm:$0xff]
    %v1257 = vld [vmem:[#allocation2 + $0x4e8] sm:$0xff]
    %v1258 = vld [vmem:[#allocation2 + $0x4f0] sm:$0xff]
    %v1259 = vld [vmem:[#allocation2 + $0x4f8] sm:$0xff]
    %v1260 = vld [vmem:[#allocation2 + $0x500] sm:$0xff]
    %v1261 = vld [vmem:[#allocation2 + $0x508] sm:$0xff]
    %v1262 = vld [vmem:[#allocation2 + $0x510] sm:$0xff]
    %v1263 = vld [vmem:[#allocation2 + $0x518] sm:$0xff]
    %v1264 = vld [vmem:[#allocation2 + $0x520] sm:$0xff]
    %v1265 = vld [vmem:[#allocation2 + $0x528] sm:$0xff]
    %v1266 = vld [vmem:[#allocation2 + $0x530] sm:$0xff]
    %v1267 = vld [vmem:[#allocation2 + $0x538] sm:$0xff]
    %v1268 = vld [vmem:[#allocation2 + $0x540] sm:$0xff]
    %v1269 = vld [vmem:[#allocation2 + $0x548] sm:$0xff]
    %v1270 = vld [vmem:[#allocation2 + $0x550] sm:$0xff]
    %v1271 = vld [vmem:[#allocation2 + $0x558] sm:$0xff]
    %v1272 = vld [vmem:[#allocation2 + $0x560] sm:$0xff]
    %v1273 = vld [vmem:[#allocation2 + $0x568] sm:$0xff]
    %v1274 = vld [vmem:[#allocation2 + $0x570] sm:$0xff]
    %v1275 = vld [vmem:[#allocation2 + $0x578] sm:$0xff]
    %v1276 = vld [vmem:[#allocation2 + $0x580] sm:$0xff]
    %v1277 = vld [vmem:[#allocation2 + $0x588] sm:$0xff]
    %v1278 = vld [vmem:[#allocation2 + $0x590] sm:$0xff]
    %v1279 = vld [vmem:[#allocation2 + $0x598] sm:$0xff]
    %v1280 = vld [vmem:[#allocation2 + $0x5a0] sm:$0xff]
    %v1281 = vld [vmem:[#allocation2 + $0x5a8] sm:$0xff]
    %v1282 = vld [vmem:[#allocation2 + $0x5b0] sm:$0xff]
    %v1283 = vld [vmem:[#allocation2 + $0x5b8] sm:$0xff]
    %v1284 = vld [vmem:[#allocation2 + $0x5c0] sm:$0xff]
    %v1285 = vld [vmem:[#allocation2 + $0x5c8] sm:$0xff]
    %v1286 = vld [vmem:[#allocation2 + $0x5d0] sm:$0xff]
    %v1287 = vld [vmem:[#allocation2 + $0x5d8] sm:$0xff]
    %v1288 = vld [vmem:[#allocation2 + $0x5e0] sm:$0xff]
    %v1289 = vld [vmem:[#allocation2 + $0x5e8] sm:$0xff]
    %v1290 = vld [vmem:[#allocation2 + $0x5f0] sm:$0xff]
    %v1291 = vld [vmem:[#allocation2 + $0x5f8] sm:$0xff]
    %1292 = vmatpush.msra.mxu0 %v1130
    %1293 = vmatpush.msra.mxu0 %v1128
    %1294 = vmatpush.msra.mxu0 %v1126
    %1295 = vmatpush.msra.mxu0 %v1124
    %1296 = vmatpush.msra.mxu0 %v1122
    %1297 = vmatpush.msra.mxu0 %v1120
    %1298 = vmatpush.msra.mxu0 %v1118
    %1299 = vmatpush.msra.mxu0 %v1116
    %1300 = vmatpush.msra.mxu0 %v1114
    %1301 = vmatpush.msra.mxu0 %v1112
    %1302 = vmatpush.msra.mxu0 %v1110
    %1303 = vmatpush.msra.mxu0 %v1108
    %1304 = vmatpush.msra.mxu0 %v1106
    %1305 = vmatpush.msra.mxu0 %v1104
    %1306 = vmatpush.msra.mxu0 %v1102
    %1307 = vmatpush.msra.mxu0 %v1100
    %1308 = vmatmul.f32.gmra.mxu0 %v1092
    %v1309 = vpop.f32.mrf.mxu0
    %v1310 = vadd.f32 0.0, %v1309
    %1311 = vmatmul.f32.gmra.mxu0 %v1094
    %v1312 = vpop.f32.mrf.mxu0
    %v1313 = vadd.f32 0.0, %v1312
    %1314 = vmatmul.f32.gmra.mxu0 %v1096
    %v1315 = vpop.f32.mrf.mxu0
    %v1316 = vadd.f32 0.0, %v1315
    %1317 = vmatmul.f32.gmra.mxu0 %v1098
    %v1318 = vpop.f32.mrf.mxu0
    %v1319 = vadd.f32 0.0, %v1318
    %1320 = vdwg.mxu0
    %1321 = vmatpush.msra.mxu0 %v1162
    %1322 = vmatpush.msra.mxu0 %v1160
    %1323 = vmatpush.msra.mxu0 %v1158
    %1324 = vmatpush.msra.mxu0 %v1156
    %1325 = vmatpush.msra.mxu0 %v1154
    %1326 = vmatpush.msra.mxu0 %v1152
    %1327 = vmatpush.msra.mxu0 %v1150
    %1328 = vmatpush.msra.mxu0 %v1148
    %1329 = vmatpush.msra.mxu0 %v1146
    %1330 = vmatpush.msra.mxu0 %v1144
    %1331 = vmatpush.msra.mxu0 %v1142
    %1332 = vmatpush.msra.mxu0 %v1140
    %1333 = vmatpush.msra.mxu0 %v1138
    %1334 = vmatpush.msra.mxu0 %v1136
    %1335 = vmatpush.msra.mxu0 %v1134
    %1336 = vmatpush.msra.mxu0 %v1132
    %1337 = vmatmul.f32.gmra.mxu0 %v1093
    %v1338 = vpop.f32.mrf.mxu0
    %v1339 = vadd.f32 %v1310, %v1338
    %1340 = vmatmul.f32.gmra.mxu0 %v1095
    %v1341 = vpop.f32.mrf.mxu0
    %v1342 = vadd.f32 %v1313, %v1341
    %1343 = vmatmul.f32.gmra.mxu0 %v1097
    %v1344 = vpop.f32.mrf.mxu0
    %v1345 = vadd.f32 %v1316, %v1344
    %1346 = vmatmul.f32.gmra.mxu0 %v1099
    %v1347 = vpop.f32.mrf.mxu0
    %v1348 = vadd.f32 %v1319, %v1347
    %1349 = vdwg.mxu0
    %1350 = vmatpush.msra.mxu0 %v1194
    %1351 = vmatpush.msra.mxu0 %v1192
    %1352 = vmatpush.msra.mxu0 %v1190
    %1353 = vmatpush.msra.mxu0 %v1188
    %1354 = vmatpush.msra.mxu0 %v1186
    %1355 = vmatpush.msra.mxu0 %v1184
    %1356 = vmatpush.msra.mxu0 %v1182
    %1357 = vmatpush.msra.mxu0 %v1180
    %1358 = vmatpush.msra.mxu0 %v1178
    %1359 = vmatpush.msra.mxu0 %v1176
    %1360 = vmatpush.msra.mxu0 %v1174
    %1361 = vmatpush.msra.mxu0 %v1172
    %1362 = vmatpush.msra.mxu0 %v1170
    %1363 = vmatpush.msra.mxu0 %v1168
    %1364 = vmatpush.msra.mxu0 %v1166
    %1365 = vmatpush.msra.mxu0 %v1164
    %1366 = vmatmul.f32.gmra.mxu0 %v1060
    %v1367 = vpop.f32.mrf.mxu0
    %v1368 = vadd.f32 %v1339, %v1367
    %1369 = vmatmul.f32.gmra.mxu0 %v1064
    %v1370 = vpop.f32.mrf.mxu0
    %v1371 = vadd.f32 %v1342, %v1370
    %1372 = vmatmul.f32.gmra.mxu0 %v1068
    %v1373 = vpop.f32.mrf.mxu0
    %v1374 = vadd.f32 %v1345, %v1373
    %1375 = vmatmul.f32.gmra.mxu0 %v1072
    %v1376 = vpop.f32.mrf.mxu0
    %v1377 = vadd.f32 %v1348, %v1376
    %1378 = vdwg.mxu0
    %1379 = vmatpush.msra.mxu0 %v1226
    %1380 = vmatpush.msra.mxu0 %v1224
    %1381 = vmatpush.msra.mxu0 %v1222
    %1382 = vmatpush.msra.mxu0 %v1220
    %1383 = vmatpush.msra.mxu0 %v1218
    %1384 = vmatpush.msra.mxu0 %v1216
    %1385 = vmatpush.msra.mxu0 %v1214
    %1386 = vmatpush.msra.mxu0 %v1212
    %1387 = vmatpush.msra.mxu0 %v1210
    %1388 = vmatpush.msra.mxu0 %v1208
    %1389 = vmatpush.msra.mxu0 %v1206
    %1390 = vmatpush.msra.mxu0 %v1204
    %1391 = vmatpush.msra.mxu0 %v1202
    %1392 = vmatpush.msra.mxu0 %v1200
    %1393 = vmatpush.msra.mxu0 %v1198
    %1394 = vmatpush.msra.mxu0 %v1196
    %1395 = vmatmul.f32.gmra.mxu0 %v1061
    %v1396 = vpop.f32.mrf.mxu0
    %v1397 = vadd.f32 %v1368, %v1396
    %1398 = vmatmul.f32.gmra.mxu0 %v1065
    %v1399 = vpop.f32.mrf.mxu0
    %v1400 = vadd.f32 %v1371, %v1399
    %1401 = vmatmul.f32.gmra.mxu0 %v1069
    %v1402 = vpop.f32.mrf.mxu0
    %v1403 = vadd.f32 %v1374, %v1402
    %1404 = vmatmul.f32.gmra.mxu0 %v1073
    %v1405 = vpop.f32.mrf.mxu0
    %v1406 = vadd.f32 %v1377, %v1405
    %1407 = vdwg.mxu0
    %1408 = vmatpush.msra.mxu0 %v1258
    %1409 = vmatpush.msra.mxu0 %v1256
    %1410 = vmatpush.msra.mxu0 %v1254
    %1411 = vmatpush.msra.mxu0 %v1252
    %1412 = vmatpush.msra.mxu0 %v1250
    %1413 = vmatpush.msra.mxu0 %v1248
    %1414 = vmatpush.msra.mxu0 %v1246
    %1415 = vmatpush.msra.mxu0 %v1244
    %1416 = vmatpush.msra.mxu0 %v1242
    %1417 = vmatpush.msra.mxu0 %v1240
    %1418 = vmatpush.msra.mxu0 %v1238
    %1419 = vmatpush.msra.mxu0 %v1236
    %1420 = vmatpush.msra.mxu0 %v1234
    %1421 = vmatpush.msra.mxu0 %v1232
    %1422 = vmatpush.msra.mxu0 %v1230
    %1423 = vmatpush.msra.mxu0 %v1228
    %1424 = vmatmul.f32.gmra.mxu0 %v1062
    %v1425 = vpop.f32.mrf.mxu0
    %v1426 = vadd.f32 %v1397, %v1425
    %1427 = vmatmul.f32.gmra.mxu0 %v1066
    %v1428 = vpop.f32.mrf.mxu0
    %v1429 = vadd.f32 %v1400, %v1428
    %1430 = vmatmul.f32.gmra.mxu0 %v1070
    %v1431 = vpop.f32.mrf.mxu0
    %v1432 = vadd.f32 %v1403, %v1431
    %1433 = vmatmul.f32.gmra.mxu0 %v1074
    %v1434 = vpop.f32.mrf.mxu0
    %v1435 = vadd.f32 %v1406, %v1434
    %1436 = vdwg.mxu0
    %1437 = vmatpush.msra.mxu0 %v1290
    %1438 = vmatpush.msra.mxu0 %v1288
    %1439 = vmatpush.msra.mxu0 %v1286
    %1440 = vmatpush.msra.mxu0 %v1284
    %1441 = vmatpush.msra.mxu0 %v1282
    %1442 = vmatpush.msra.mxu0 %v1280
    %1443 = vmatpush.msra.mxu0 %v1278
    %1444 = vmatpush.msra.mxu0 %v1276
    %1445 = vmatpush.msra.mxu0 %v1274
    %1446 = vmatpush.msra.mxu0 %v1272
    %1447 = vmatpush.msra.mxu0 %v1270
    %1448 = vmatpush.msra.mxu0 %v1268
    %1449 = vmatpush.msra.mxu0 %v1266
    %1450 = vmatpush.msra.mxu0 %v1264
    %1451 = vmatpush.msra.mxu0 %v1262
    %1452 = vmatpush.msra.mxu0 %v1260
    %1453 = vmatmul.f32.gmra.mxu0 %v1063
    %v1454 = vpop.f32.mrf.mxu0
    %v1455 = vadd.f32 %v1426, %v1454
    %1456 = vmatmul.f32.gmra.mxu0 %v1067
    %v1457 = vpop.f32.mrf.mxu0
    %v1458 = vadd.f32 %v1429, %v1457
    %1459 = vmatmul.f32.gmra.mxu0 %v1071
    %v1460 = vpop.f32.mrf.mxu0
    %v1461 = vadd.f32 %v1432, %v1460
    %1462 = vmatmul.f32.gmra.mxu0 %v1075
    %v1463 = vpop.f32.mrf.mxu0
    %v1464 = vadd.f32 %v1435, %v1463
    %1465 = vdwg.mxu0
    %1466 = vmatpush.msra.mxu0 %v1131
    %1467 = vmatpush.msra.mxu0 %v1129
    %1468 = vmatpush.msra.mxu0 %v1127
    %1469 = vmatpush.msra.mxu0 %v1125
    %1470 = vmatpush.msra.mxu0 %v1123
    %1471 = vmatpush.msra.mxu0 %v1121
    %1472 = vmatpush.msra.mxu0 %v1119
    %1473 = vmatpush.msra.mxu0 %v1117
    %1474 = vmatpush.msra.mxu0 %v1115
    %1475 = vmatpush.msra.mxu0 %v1113
    %1476 = vmatpush.msra.mxu0 %v1111
    %1477 = vmatpush.msra.mxu0 %v1109
    %1478 = vmatpush.msra.mxu0 %v1107
    %1479 = vmatpush.msra.mxu0 %v1105
    %1480 = vmatpush.msra.mxu0 %v1103
    %1481 = vmatpush.msra.mxu0 %v1101
    %1482 = vmatmul.f32.gmra.mxu0 %v1092
    %v1483 = vpop.f32.mrf.mxu0
    %v1484 = vadd.f32 0.0, %v1483
    %1485 = vmatmul.f32.gmra.mxu0 %v1094
    %v1486 = vpop.f32.mrf.mxu0
    %v1487 = vadd.f32 0.0, %v1486
    %1488 = vmatmul.f32.gmra.mxu0 %v1096
    %v1489 = vpop.f32.mrf.mxu0
    %v1490 = vadd.f32 0.0, %v1489
    %1491 = vmatmul.f32.gmra.mxu0 %v1098
    %v1492 = vpop.f32.mrf.mxu0
    %v1493 = vadd.f32 0.0, %v1492
    %1494 = vdwg.mxu0
    %1495 = vmatpush.msra.mxu0 %v1163
    %1496 = vmatpush.msra.mxu0 %v1161
    %1497 = vmatpush.msra.mxu0 %v1159
    %1498 = vmatpush.msra.mxu0 %v1157
    %1499 = vmatpush.msra.mxu0 %v1155
    %1500 = vmatpush.msra.mxu0 %v1153
    %1501 = vmatpush.msra.mxu0 %v1151
    %1502 = vmatpush.msra.mxu0 %v1149
    %1503 = vmatpush.msra.mxu0 %v1147
    %1504 = vmatpush.msra.mxu0 %v1145
    %1505 = vmatpush.msra.mxu0 %v1143
    %1506 = vmatpush.msra.mxu0 %v1141
    %1507 = vmatpush.msra.mxu0 %v1139
    %1508 = vmatpush.msra.mxu0 %v1137
    %1509 = vmatpush.msra.mxu0 %v1135
    %1510 = vmatpush.msra.mxu0 %v1133
    %1511 = vmatmul.f32.gmra.mxu0 %v1093
    %v1512 = vpop.f32.mrf.mxu0
    %v1513 = vadd.f32 %v1484, %v1512
    %1514 = vmatmul.f32.gmra.mxu0 %v1095
    %v1515 = vpop.f32.mrf.mxu0
    %v1516 = vadd.f32 %v1487, %v1515
    %1517 = vmatmul.f32.gmra.mxu0 %v1097
    %v1518 = vpop.f32.mrf.mxu0
    %v1519 = vadd.f32 %v1490, %v1518
    %1520 = vmatmul.f32.gmra.mxu0 %v1099
    %v1521 = vpop.f32.mrf.mxu0
    %v1522 = vadd.f32 %v1493, %v1521
    %1523 = vdwg.mxu0
    %1524 = vmatpush.msra.mxu0 %v1195
    %1525 = vmatpush.msra.mxu0 %v1193
    %1526 = vmatpush.msra.mxu0 %v1191
    %1527 = vmatpush.msra.mxu0 %v1189
    %1528 = vmatpush.msra.mxu0 %v1187
    %1529 = vmatpush.msra.mxu0 %v1185
    %1530 = vmatpush.msra.mxu0 %v1183
    %1531 = vmatpush.msra.mxu0 %v1181
    %1532 = vmatpush.msra.mxu0 %v1179
    %1533 = vmatpush.msra.mxu0 %v1177
    %1534 = vmatpush.msra.mxu0 %v1175
    %1535 = vmatpush.msra.mxu0 %v1173
    %1536 = vmatpush.msra.mxu0 %v1171
    %1537 = vmatpush.msra.mxu0 %v1169
    %1538 = vmatpush.msra.mxu0 %v1167
    %1539 = vmatpush.msra.mxu0 %v1165
    %1540 = vmatmul.f32.gmra.mxu0 %v1060
    %v1541 = vpop.f32.mrf.mxu0
    %v1542 = vadd.f32 %v1513, %v1541
    %1543 = vmatmul.f32.gmra.mxu0 %v1064
    %v1544 = vpop.f32.mrf.mxu0
    %v1545 = vadd.f32 %v1516, %v1544
    %1546 = vmatmul.f32.gmra.mxu0 %v1068
    %v1547 = vpop.f32.mrf.mxu0
    %v1548 = vadd.f32 %v1519, %v1547
    %1549 = vmatmul.f32.gmra.mxu0 %v1072
    %v1550 = vpop.f32.mrf.mxu0
    %v1551 = vadd.f32 %v1522, %v1550
    %1552 = vdwg.mxu0
    %1553 = vmatpush.msra.mxu0 %v1227
    %1554 = vmatpush.msra.mxu0 %v1225
    %1555 = vmatpush.msra.mxu0 %v1223
    %1556 = vmatpush.msra.mxu0 %v1221
    %1557 = vmatpush.msra.mxu0 %v1219
    %1558 = vmatpush.msra.mxu0 %v1217
    %1559 = vmatpush.msra.mxu0 %v1215
    %1560 = vmatpush.msra.mxu0 %v1213
    %1561 = vmatpush.msra.mxu0 %v1211
    %1562 = vmatpush.msra.mxu0 %v1209
    %1563 = vmatpush.msra.mxu0 %v1207
    %1564 = vmatpush.msra.mxu0 %v1205
    %1565 = vmatpush.msra.mxu0 %v1203
    %1566 = vmatpush.msra.mxu0 %v1201
    %1567 = vmatpush.msra.mxu0 %v1199
    %1568 = vmatpush.msra.mxu0 %v1197
    %1569 = vmatmul.f32.gmra.mxu0 %v1061
    %v1570 = vpop.f32.mrf.mxu0
    %v1571 = vadd.f32 %v1542, %v1570
    %1572 = vmatmul.f32.gmra.mxu0 %v1065
    %v1573 = vpop.f32.mrf.mxu0
    %v1574 = vadd.f32 %v1545, %v1573
    %1575 = vmatmul.f32.gmra.mxu0 %v1069
    %v1576 = vpop.f32.mrf.mxu0
    %v1577 = vadd.f32 %v1548, %v1576
    %1578 = vmatmul.f32.gmra.mxu0 %v1073
    %v1579 = vpop.f32.mrf.mxu0
    %v1580 = vadd.f32 %v1551, %v1579
    %1581 = vdwg.mxu0
    %1582 = vmatpush.msra.mxu0 %v1259
    %1583 = vmatpush.msra.mxu0 %v1257
    %1584 = vmatpush.msra.mxu0 %v1255
    %1585 = vmatpush.msra.mxu0 %v1253
    %1586 = vmatpush.msra.mxu0 %v1251
    %1587 = vmatpush.msra.mxu0 %v1249
    %1588 = vmatpush.msra.mxu0 %v1247
    %1589 = vmatpush.msra.mxu0 %v1245
    %1590 = vmatpush.msra.mxu0 %v1243
    %1591 = vmatpush.msra.mxu0 %v1241
    %1592 = vmatpush.msra.mxu0 %v1239
    %1593 = vmatpush.msra.mxu0 %v1237
    %1594 = vmatpush.msra.mxu0 %v1235
    %1595 = vmatpush.msra.mxu0 %v1233
    %1596 = vmatpush.msra.mxu0 %v1231
    %1597 = vmatpush.msra.mxu0 %v1229
    %1598 = vmatmul.f32.gmra.mxu0 %v1062
    %v1599 = vpop.f32.mrf.mxu0
    %v1600 = vadd.f32 %v1571, %v1599
    %1601 = vmatmul.f32.gmra.mxu0 %v1066
    %v1602 = vpop.f32.mrf.mxu0
    %v1603 = vadd.f32 %v1574, %v1602
    %1604 = vmatmul.f32.gmra.mxu0 %v1070
    %v1605 = vpop.f32.mrf.mxu0
    %v1606 = vadd.f32 %v1577, %v1605
    %1607 = vmatmul.f32.gmra.mxu0 %v1074
    %v1608 = vpop.f32.mrf.mxu0
    %v1609 = vadd.f32 %v1580, %v1608
    %1610 = vdwg.mxu0
    %1611 = vmatpush.msra.mxu0 %v1291
    %1612 = vmatpush.msra.mxu0 %v1289
    %1613 = vmatpush.msra.mxu0 %v1287
    %1614 = vmatpush.msra.mxu0 %v1285
    %1615 = vmatpush.msra.mxu0 %v1283
    %1616 = vmatpush.msra.mxu0 %v1281
    %1617 = vmatpush.msra.mxu0 %v1279
    %1618 = vmatpush.msra.mxu0 %v1277
    %1619 = vmatpush.msra.mxu0 %v1275
    %1620 = vmatpush.msra.mxu0 %v1273
    %1621 = vmatpush.msra.mxu0 %v1271
    %1622 = vmatpush.msra.mxu0 %v1269
    %1623 = vmatpush.msra.mxu0 %v1267
    %1624 = vmatpush.msra.mxu0 %v1265
    %1625 = vmatpush.msra.mxu0 %v1263
    %1626 = vmatpush.msra.mxu0 %v1261
    %1627 = vmatmul.f32.gmra.mxu0 %v1063
    %v1628 = vpop.f32.mrf.mxu0
    %v1629 = vadd.f32 %v1600, %v1628
    %1630 = vmatmul.f32.gmra.mxu0 %v1067
    %v1631 = vpop.f32.mrf.mxu0
    %v1632 = vadd.f32 %v1603, %v1631
    %1633 = vmatmul.f32.gmra.mxu0 %v1071
    %v1634 = vpop.f32.mrf.mxu0
    %v1635 = vadd.f32 %v1606, %v1634
    %1636 = vmatmul.f32.gmra.mxu0 %v1075
    %v1637 = vpop.f32.mrf.mxu0
    %v1638 = vadd.f32 %v1609, %v1637
    %1639 = vdwg.mxu0
    %v1640 = vrot.slane %v1060, 1
    %v1641 = vrot.slane %v1061, 1
    %v1642 = vrot.slane %v1064, 1
    %v1643 = vrot.slane %v1065, 1
    %v1644 = vrot.slane %v1068, 1
    %v1645 = vrot.slane %v1069, 1
    %v1646 = vrot.slane %v1072, 1
    %v1647 = vrot.slane %v1073, 1
    %v1648 = vsel %vm276, %v1644, %v1646
    %v1649 = vsel %vm276, %v1645, %v1647
    %v1650 = vsel %vm276, %v1642, %v1644
    %v1651 = vsel %vm276, %v1643, %v1645
    %v1652 = vsel %vm276, %v1640, %v1642
    %v1653 = vsel %vm276, %v1641, %v1643
    %v1654 = vsel %vm276, %v1646, %v1640
    %v1655 = vsel %vm276, %v1647, %v1641
    %v1656 = vsel %vm268, 0.0, %v1652
    %v1657 = vsel %vm268, 0.0, %v1653
    %v1658 = vsel %vm269, 0.0, %v1650
    %v1659 = vsel %vm269, 0.0, %v1651
    %v1660 = vsel %vm270, 0.0, %v1648
    %v1661 = vsel %vm270, 0.0, %v1649
    %v1662 = vsel %vm271, 0.0, %v1654
    %v1663 = vsel %vm271, 0.0, %v1655
    %1664 = vmatpush.msra.mxu0 %v1130
    %1665 = vmatpush.msra.mxu0 %v1128
    %1666 = vmatpush.msra.mxu0 %v1126
    %1667 = vmatpush.msra.mxu0 %v1124
    %1668 = vmatpush.msra.mxu0 %v1122
    %1669 = vmatpush.msra.mxu0 %v1120
    %1670 = vmatpush.msra.mxu0 %v1118
    %1671 = vmatpush.msra.mxu0 %v1116
    %1672 = vmatpush.msra.mxu0 %v1114
    %1673 = vmatpush.msra.mxu0 %v1112
    %1674 = vmatpush.msra.mxu0 %v1110
    %1675 = vmatpush.msra.mxu0 %v1108
    %1676 = vmatpush.msra.mxu0 %v1106
    %1677 = vmatpush.msra.mxu0 %v1104
    %1678 = vmatpush.msra.mxu0 %v1102
    %1679 = vmatpush.msra.mxu0 %v1100
    %1680 = vmatmul.f32.gmra.mxu0 %v1060
    %v1681 = vpop.f32.mrf.mxu0
    %v1682 = vadd.f32 0.0, %v1681
    %1683 = vmatmul.f32.gmra.mxu0 %v1064
    %v1684 = vpop.f32.mrf.mxu0
    %v1685 = vadd.f32 0.0, %v1684
    %1686 = vmatmul.f32.gmra.mxu0 %v1068
    %v1687 = vpop.f32.mrf.mxu0
    %v1688 = vadd.f32 0.0, %v1687
    %1689 = vmatmul.f32.gmra.mxu0 %v1072
    %v1690 = vpop.f32.mrf.mxu0
    %v1691 = vadd.f32 0.0, %v1690
    %1692 = vdwg.mxu0
    %1693 = vmatpush.msra.mxu0 %v1162
    %1694 = vmatpush.msra.mxu0 %v1160
    %1695 = vmatpush.msra.mxu0 %v1158
    %1696 = vmatpush.msra.mxu0 %v1156
    %1697 = vmatpush.msra.mxu0 %v1154
    %1698 = vmatpush.msra.mxu0 %v1152
    %1699 = vmatpush.msra.mxu0 %v1150
    %1700 = vmatpush.msra.mxu0 %v1148
    %1701 = vmatpush.msra.mxu0 %v1146
    %1702 = vmatpush.msra.mxu0 %v1144
    %1703 = vmatpush.msra.mxu0 %v1142
    %1704 = vmatpush.msra.mxu0 %v1140
    %1705 = vmatpush.msra.mxu0 %v1138
    %1706 = vmatpush.msra.mxu0 %v1136
    %1707 = vmatpush.msra.mxu0 %v1134
    %1708 = vmatpush.msra.mxu0 %v1132
    %1709 = vmatmul.f32.gmra.mxu0 %v1061
    %v1710 = vpop.f32.mrf.mxu0
    %v1711 = vadd.f32 %v1682, %v1710
    %1712 = vmatmul.f32.gmra.mxu0 %v1065
    %v1713 = vpop.f32.mrf.mxu0
    %v1714 = vadd.f32 %v1685, %v1713
    %1715 = vmatmul.f32.gmra.mxu0 %v1069
    %v1716 = vpop.f32.mrf.mxu0
    %v1717 = vadd.f32 %v1688, %v1716
    %1718 = vmatmul.f32.gmra.mxu0 %v1073
    %v1719 = vpop.f32.mrf.mxu0
    %v1720 = vadd.f32 %v1691, %v1719
    %1721 = vdwg.mxu0
    %1722 = vmatpush.msra.mxu0 %v1194
    %1723 = vmatpush.msra.mxu0 %v1192
    %1724 = vmatpush.msra.mxu0 %v1190
    %1725 = vmatpush.msra.mxu0 %v1188
    %1726 = vmatpush.msra.mxu0 %v1186
    %1727 = vmatpush.msra.mxu0 %v1184
    %1728 = vmatpush.msra.mxu0 %v1182
    %1729 = vmatpush.msra.mxu0 %v1180
    %1730 = vmatpush.msra.mxu0 %v1178
    %1731 = vmatpush.msra.mxu0 %v1176
    %1732 = vmatpush.msra.mxu0 %v1174
    %1733 = vmatpush.msra.mxu0 %v1172
    %1734 = vmatpush.msra.mxu0 %v1170
    %1735 = vmatpush.msra.mxu0 %v1168
    %1736 = vmatpush.msra.mxu0 %v1166
    %1737 = vmatpush.msra.mxu0 %v1164
    %1738 = vmatmul.f32.gmra.mxu0 %v1062
    %v1739 = vpop.f32.mrf.mxu0
    %v1740 = vadd.f32 %v1711, %v1739
    %1741 = vmatmul.f32.gmra.mxu0 %v1066
    %v1742 = vpop.f32.mrf.mxu0
    %v1743 = vadd.f32 %v1714, %v1742
    %1744 = vmatmul.f32.gmra.mxu0 %v1070
    %v1745 = vpop.f32.mrf.mxu0
    %v1746 = vadd.f32 %v1717, %v1745
    %1747 = vmatmul.f32.gmra.mxu0 %v1074
    %v1748 = vpop.f32.mrf.mxu0
    %v1749 = vadd.f32 %v1720, %v1748
    %1750 = vdwg.mxu0
    %1751 = vmatpush.msra.mxu0 %v1226
    %1752 = vmatpush.msra.mxu0 %v1224
    %1753 = vmatpush.msra.mxu0 %v1222
    %1754 = vmatpush.msra.mxu0 %v1220
    %1755 = vmatpush.msra.mxu0 %v1218
    %1756 = vmatpush.msra.mxu0 %v1216
    %1757 = vmatpush.msra.mxu0 %v1214
    %1758 = vmatpush.msra.mxu0 %v1212
    %1759 = vmatpush.msra.mxu0 %v1210
    %1760 = vmatpush.msra.mxu0 %v1208
    %1761 = vmatpush.msra.mxu0 %v1206
    %1762 = vmatpush.msra.mxu0 %v1204
    %1763 = vmatpush.msra.mxu0 %v1202
    %1764 = vmatpush.msra.mxu0 %v1200
    %1765 = vmatpush.msra.mxu0 %v1198
    %1766 = vmatpush.msra.mxu0 %v1196
    %1767 = vmatmul.f32.gmra.mxu0 %v1063
    %v1768 = vpop.f32.mrf.mxu0
    %v1769 = vadd.f32 %v1740, %v1768
    %1770 = vmatmul.f32.gmra.mxu0 %v1067
    %v1771 = vpop.f32.mrf.mxu0
    %v1772 = vadd.f32 %v1743, %v1771
    %1773 = vmatmul.f32.gmra.mxu0 %v1071
    %v1774 = vpop.f32.mrf.mxu0
    %v1775 = vadd.f32 %v1746, %v1774
    %1776 = vmatmul.f32.gmra.mxu0 %v1075
    %v1777 = vpop.f32.mrf.mxu0
    %v1778 = vadd.f32 %v1749, %v1777
    %1779 = vdwg.mxu0
    %1780 = vmatpush.msra.mxu0 %v1258
    %1781 = vmatpush.msra.mxu0 %v1256
    %1782 = vmatpush.msra.mxu0 %v1254
    %1783 = vmatpush.msra.mxu0 %v1252
    %1784 = vmatpush.msra.mxu0 %v1250
    %1785 = vmatpush.msra.mxu0 %v1248
    %1786 = vmatpush.msra.mxu0 %v1246
    %1787 = vmatpush.msra.mxu0 %v1244
    %1788 = vmatpush.msra.mxu0 %v1242
    %1789 = vmatpush.msra.mxu0 %v1240
    %1790 = vmatpush.msra.mxu0 %v1238
    %1791 = vmatpush.msra.mxu0 %v1236
    %1792 = vmatpush.msra.mxu0 %v1234
    %1793 = vmatpush.msra.mxu0 %v1232
    %1794 = vmatpush.msra.mxu0 %v1230
    %1795 = vmatpush.msra.mxu0 %v1228
    %1796 = vmatmul.f32.gmra.mxu0 %v1656
    %v1797 = vpop.f32.mrf.mxu0
    %v1798 = vadd.f32 %v1769, %v1797
    %1799 = vmatmul.f32.gmra.mxu0 %v1658
    %v1800 = vpop.f32.mrf.mxu0
    %v1801 = vadd.f32 %v1772, %v1800
    %1802 = vmatmul.f32.gmra.mxu0 %v1660
    %v1803 = vpop.f32.mrf.mxu0
    %v1804 = vadd.f32 %v1775, %v1803
    %1805 = vmatmul.f32.gmra.mxu0 %v1662
    %v1806 = vpop.f32.mrf.mxu0
    %v1807 = vadd.f32 %v1778, %v1806
    %1808 = vdwg.mxu0
    %1809 = vmatpush.msra.mxu0 %v1290
    %1810 = vmatpush.msra.mxu0 %v1288
    %1811 = vmatpush.msra.mxu0 %v1286
    %1812 = vmatpush.msra.mxu0 %v1284
    %1813 = vmatpush.msra.mxu0 %v1282
    %1814 = vmatpush.msra.mxu0 %v1280
    %1815 = vmatpush.msra.mxu0 %v1278
    %1816 = vmatpush.msra.mxu0 %v1276
    %1817 = vmatpush.msra.mxu0 %v1274
    %1818 = vmatpush.msra.mxu0 %v1272
    %1819 = vmatpush.msra.mxu0 %v1270
    %1820 = vmatpush.msra.mxu0 %v1268
    %1821 = vmatpush.msra.mxu0 %v1266
    %1822 = vmatpush.msra.mxu0 %v1264
    %1823 = vmatpush.msra.mxu0 %v1262
    %1824 = vmatpush.msra.mxu0 %v1260
    %1825 = vmatmul.f32.gmra.mxu0 %v1657
    %v1826 = vpop.f32.mrf.mxu0
    %v1827 = vadd.f32 %v1798, %v1826
    %1828 = vmatmul.f32.gmra.mxu0 %v1659
    %v1829 = vpop.f32.mrf.mxu0
    %v1830 = vadd.f32 %v1801, %v1829
    %1831 = vmatmul.f32.gmra.mxu0 %v1661
    %v1832 = vpop.f32.mrf.mxu0
    %v1833 = vadd.f32 %v1804, %v1832
    %1834 = vmatmul.f32.gmra.mxu0 %v1663
    %v1835 = vpop.f32.mrf.mxu0
    %v1836 = vadd.f32 %v1807, %v1835
    %1837 = vdwg.mxu0
    %1838 = vmatpush.msra.mxu0 %v1131
    %1839 = vmatpush.msra.mxu0 %v1129
    %1840 = vmatpush.msra.mxu0 %v1127
    %1841 = vmatpush.msra.mxu0 %v1125
    %1842 = vmatpush.msra.mxu0 %v1123
    %1843 = vmatpush.msra.mxu0 %v1121
    %1844 = vmatpush.msra.mxu0 %v1119
    %1845 = vmatpush.msra.mxu0 %v1117
    %1846 = vmatpush.msra.mxu0 %v1115
    %1847 = vmatpush.msra.mxu0 %v1113
    %1848 = vmatpush.msra.mxu0 %v1111
    %1849 = vmatpush.msra.mxu0 %v1109
    %1850 = vmatpush.msra.mxu0 %v1107
    %1851 = vmatpush.msra.mxu0 %v1105
    %1852 = vmatpush.msra.mxu0 %v1103
    %1853 = vmatpush.msra.mxu0 %v1101
    %1854 = vmatmul.f32.gmra.mxu0 %v1060
    %v1855 = vpop.f32.mrf.mxu0
    %v1856 = vadd.f32 0.0, %v1855
    %1857 = vmatmul.f32.gmra.mxu0 %v1064
    %v1858 = vpop.f32.mrf.mxu0
    %v1859 = vadd.f32 0.0, %v1858
    %1860 = vmatmul.f32.gmra.mxu0 %v1068
    %v1861 = vpop.f32.mrf.mxu0
    %v1862 = vadd.f32 0.0, %v1861
    %1863 = vmatmul.f32.gmra.mxu0 %v1072
    %v1864 = vpop.f32.mrf.mxu0
    %v1865 = vadd.f32 0.0, %v1864
    %1866 = vdwg.mxu0
    %1867 = vmatpush.msra.mxu0 %v1163
    %1868 = vmatpush.msra.mxu0 %v1161
    %1869 = vmatpush.msra.mxu0 %v1159
    %1870 = vmatpush.msra.mxu0 %v1157
    %1871 = vmatpush.msra.mxu0 %v1155
    %1872 = vmatpush.msra.mxu0 %v1153
    %1873 = vmatpush.msra.mxu0 %v1151
    %1874 = vmatpush.msra.mxu0 %v1149
    %1875 = vmatpush.msra.mxu0 %v1147
    %1876 = vmatpush.msra.mxu0 %v1145
    %1877 = vmatpush.msra.mxu0 %v1143
    %1878 = vmatpush.msra.mxu0 %v1141
    %1879 = vmatpush.msra.mxu0 %v1139
    %1880 = vmatpush.msra.mxu0 %v1137
    %1881 = vmatpush.msra.mxu0 %v1135
    %1882 = vmatpush.msra.mxu0 %v1133
    %1883 = vmatmul.f32.gmra.mxu0 %v1061
    %v1884 = vpop.f32.mrf.mxu0
    %v1885 = vadd.f32 %v1856, %v1884
    %1886 = vmatmul.f32.gmra.mxu0 %v1065
    %v1887 = vpop.f32.mrf.mxu0
    %v1888 = vadd.f32 %v1859, %v1887
    %1889 = vmatmul.f32.gmra.mxu0 %v1069
    %v1890 = vpop.f32.mrf.mxu0
    %v1891 = vadd.f32 %v1862, %v1890
    %1892 = vmatmul.f32.gmra.mxu0 %v1073
    %v1893 = vpop.f32.mrf.mxu0
    %v1894 = vadd.f32 %v1865, %v1893
    %1895 = vdwg.mxu0
    %1896 = vmatpush.msra.mxu0 %v1195
    %1897 = vmatpush.msra.mxu0 %v1193
    %1898 = vmatpush.msra.mxu0 %v1191
    %1899 = vmatpush.msra.mxu0 %v1189
    %1900 = vmatpush.msra.mxu0 %v1187
    %1901 = vmatpush.msra.mxu0 %v1185
    %1902 = vmatpush.msra.mxu0 %v1183
    %1903 = vmatpush.msra.mxu0 %v1181
    %1904 = vmatpush.msra.mxu0 %v1179
    %1905 = vmatpush.msra.mxu0 %v1177
    %1906 = vmatpush.msra.mxu0 %v1175
    %1907 = vmatpush.msra.mxu0 %v1173
    %1908 = vmatpush.msra.mxu0 %v1171
    %1909 = vmatpush.msra.mxu0 %v1169
    %1910 = vmatpush.msra.mxu0 %v1167
    %1911 = vmatpush.msra.mxu0 %v1165
    %1912 = vmatmul.f32.gmra.mxu0 %v1062
    %v1913 = vpop.f32.mrf.mxu0
    %v1914 = vadd.f32 %v1885, %v1913
    %1915 = vmatmul.f32.gmra.mxu0 %v1066
    %v1916 = vpop.f32.mrf.mxu0
    %v1917 = vadd.f32 %v1888, %v1916
    %1918 = vmatmul.f32.gmra.mxu0 %v1070
    %v1919 = vpop.f32.mrf.mxu0
    %v1920 = vadd.f32 %v1891, %v1919
    %1921 = vmatmul.f32.gmra.mxu0 %v1074
    %v1922 = vpop.f32.mrf.mxu0
    %v1923 = vadd.f32 %v1894, %v1922
    %1924 = vdwg.mxu0
    %1925 = vmatpush.msra.mxu0 %v1227
    %1926 = vmatpush.msra.mxu0 %v1225
    %1927 = vmatpush.msra.mxu0 %v1223
    %1928 = vmatpush.msra.mxu0 %v1221
    %1929 = vmatpush.msra.mxu0 %v1219
    %1930 = vmatpush.msra.mxu0 %v1217
    %1931 = vmatpush.msra.mxu0 %v1215
    %1932 = vmatpush.msra.mxu0 %v1213
    %1933 = vmatpush.msra.mxu0 %v1211
    %1934 = vmatpush.msra.mxu0 %v1209
    %1935 = vmatpush.msra.mxu0 %v1207
    %1936 = vmatpush.msra.mxu0 %v1205
    %1937 = vmatpush.msra.mxu0 %v1203
    %1938 = vmatpush.msra.mxu0 %v1201
    %1939 = vmatpush.msra.mxu0 %v1199
    %1940 = vmatpush.msra.mxu0 %v1197
    %1941 = vmatmul.f32.gmra.mxu0 %v1063
    %v1942 = vpop.f32.mrf.mxu0
    %v1943 = vadd.f32 %v1914, %v1942
    %1944 = vmatmul.f32.gmra.mxu0 %v1067
    %v1945 = vpop.f32.mrf.mxu0
    %v1946 = vadd.f32 %v1917, %v1945
    %1947 = vmatmul.f32.gmra.mxu0 %v1071
    %v1948 = vpop.f32.mrf.mxu0
    %v1949 = vadd.f32 %v1920, %v1948
    %1950 = vmatmul.f32.gmra.mxu0 %v1075
    %v1951 = vpop.f32.mrf.mxu0
    %v1952 = vadd.f32 %v1923, %v1951
    %1953 = vdwg.mxu0
    %1954 = vmatpush.msra.mxu0 %v1259
    %1955 = vmatpush.msra.mxu0 %v1257
    %1956 = vmatpush.msra.mxu0 %v1255
    %1957 = vmatpush.msra.mxu0 %v1253
    %1958 = vmatpush.msra.mxu0 %v1251
    %1959 = vmatpush.msra.mxu0 %v1249
    %1960 = vmatpush.msra.mxu0 %v1247
    %1961 = vmatpush.msra.mxu0 %v1245
    %1962 = vmatpush.msra.mxu0 %v1243
    %1963 = vmatpush.msra.mxu0 %v1241
    %1964 = vmatpush.msra.mxu0 %v1239
    %1965 = vmatpush.msra.mxu0 %v1237
    %1966 = vmatpush.msra.mxu0 %v1235
    %1967 = vmatpush.msra.mxu0 %v1233
    %1968 = vmatpush.msra.mxu0 %v1231
    %1969 = vmatpush.msra.mxu0 %v1229
    %1970 = vmatmul.f32.gmra.mxu0 %v1656
    %v1971 = vpop.f32.mrf.mxu0
    %v1972 = vadd.f32 %v1943, %v1971
    %1973 = vmatmul.f32.gmra.mxu0 %v1658
    %v1974 = vpop.f32.mrf.mxu0
    %v1975 = vadd.f32 %v1946, %v1974
    %1976 = vmatmul.f32.gmra.mxu0 %v1660
    %v1977 = vpop.f32.mrf.mxu0
    %v1978 = vadd.f32 %v1949, %v1977
    %1979 = vmatmul.f32.gmra.mxu0 %v1662
    %v1980 = vpop.f32.mrf.mxu0
    %v1981 = vadd.f32 %v1952, %v1980
    %1982 = vdwg.mxu0
    %1983 = vmatpush.msra.mxu0 %v1291
    %1984 = vmatpush.msra.mxu0 %v1289
    %1985 = vmatpush.msra.mxu0 %v1287
    %1986 = vmatpush.msra.mxu0 %v1285
    %1987 = vmatpush.msra.mxu0 %v1283
    %1988 = vmatpush.msra.mxu0 %v1281
    %1989 = vmatpush.msra.mxu0 %v1279
    %1990 = vmatpush.msra.mxu0 %v1277
    %1991 = vmatpush.msra.mxu0 %v1275
    %1992 = vmatpush.msra.mxu0 %v1273
    %1993 = vmatpush.msra.mxu0 %v1271
    %1994 = vmatpush.msra.mxu0 %v1269
    %1995 = vmatpush.msra.mxu0 %v1267
    %1996 = vmatpush.msra.mxu0 %v1265
    %1997 = vmatpush.msra.mxu0 %v1263
    %1998 = vmatpush.msra.mxu0 %v1261
    %1999 = vmatmul.f32.gmra.mxu0 %v1657
    %v2000 = vpop.f32.mrf.mxu0
    %v2001 = vadd.f32 %v1972, %v2000
    %2002 = vmatmul.f32.gmra.mxu0 %v1659
    %v2003 = vpop.f32.mrf.mxu0
    %v2004 = vadd.f32 %v1975, %v2003
    %2005 = vmatmul.f32.gmra.mxu0 %v1661
    %v2006 = vpop.f32.mrf.mxu0
    %v2007 = vadd.f32 %v1978, %v2006
    %2008 = vmatmul.f32.gmra.mxu0 %v1663
    %v2009 = vpop.f32.mrf.mxu0
    %v2010 = vadd.f32 %v1981, %v2009
    %2011 = vdwg.mxu0
    %v2012 = vld [vmem:[%s3] sm:$0xff]
    %v2013 = vld [vmem:[%s3 + $0x8] sm:$0xff]
    %v2014 = vld [vmem:[%s3 + $0x10] sm:$0xff]
    %v2015 = vld [vmem:[%s3 + $0x18] sm:$0xff]
    %v2016 = vld [vmem:[%s3 + $0x20] sm:$0xff]
    %v2017 = vld [vmem:[%s3 + $0x28] sm:$0xff]
    %v2018 = vld [vmem:[%s3 + $0x30] sm:$0xff]
    %v2019 = vld [vmem:[%s3 + $0x38] sm:$0xff]
    %v2020 = vld [vmem:[%s3 + $0x40] sm:$0xff]
    %v2021 = vld [vmem:[%s3 + $0x48] sm:$0xff]
    %v2022 = vld [vmem:[%s3 + $0x50] sm:$0xff]
    %v2023 = vld [vmem:[%s3 + $0x58] sm:$0xff]
    %v2024 = vld [vmem:[%s3 + $0x60] sm:$0xff]
    %v2025 = vld [vmem:[%s3 + $0x68] sm:$0xff]
    %v2026 = vld [vmem:[%s3 + $0x70] sm:$0xff]
    %v2027 = vld [vmem:[%s3 + $0x78] sm:$0xff]
    %v2028 = vld [vmem:[%s3 + $0x80] sm:$0xff]
    %v2029 = vld [vmem:[%s3 + $0x88] sm:$0xff]
    %v2030 = vld [vmem:[%s3 + $0x90] sm:$0xff]
    %v2031 = vld [vmem:[%s3 + $0x98] sm:$0xff]
    %v2032 = vld [vmem:[%s3 + $0xa0] sm:$0xff]
    %v2033 = vld [vmem:[%s3 + $0xa8] sm:$0xff]
    %v2034 = vld [vmem:[%s3 + $0xb0] sm:$0xff]
    %v2035 = vld [vmem:[%s3 + $0xb8] sm:$0xff]
    %v2036 = vld [vmem:[%s3 + $0xc0] sm:$0xff]
    %v2037 = vld [vmem:[%s3 + $0xc8] sm:$0xff]
    %v2038 = vld [vmem:[%s3 + $0xd0] sm:$0xff]
    %v2039 = vld [vmem:[%s3 + $0xd8] sm:$0xff]
    %v2040 = vld [vmem:[%s3 + $0xe0] sm:$0xff]
    %v2041 = vld [vmem:[%s3 + $0xe8] sm:$0xff]
    %v2042 = vld [vmem:[%s3 + $0xf0] sm:$0xff]
    %v2043 = vld [vmem:[%s3 + $0xf8] sm:$0xff]
    %v2045 = vsel %vm58, %v54, 0
    %v2048 = vsel %vm58, %v55, 0
    %v2051 = vsel %vm58, %v56, 0
    %v2054 = vsel %vm58, %v57, 0
    %2056 = vmatpush.msra.mxu0 0.0
    %2057 = vmatpush.msra.mxu0 0.0
    %2058 = vmatpush.msra.mxu0 0.0
    %2059 = vmatpush.msra.mxu0 0.0
    %2060 = vmatpush.msra.mxu0 0.0
    %2061 = vmatpush.msra.mxu0 0.0
    %2062 = vmatpush.msra.mxu0 0.0
    %2063 = vmatpush.msra.mxu0 0.0
    %2064 = vmatpush.msra.mxu0 %v2040
    %2065 = vmatpush.msra.mxu0 %v2036
    %2066 = vmatpush.msra.mxu0 %v2032
    %2067 = vmatpush.msra.mxu0 %v2028
    %2068 = vmatpush.msra.mxu0 %v2024
    %2069 = vmatpush.msra.mxu0 %v2020
    %2070 = vmatpush.msra.mxu0 %v2016
    %2071 = vmatpush.msra.mxu0 %v2012
    %2072 = vmatmul.f32.gmra.mxu0 %v2045
    %v2073 = vpop.f32.mrf.mxu0
    %v2074 = vadd.f32 0.0, %v2073
    %2075 = vmatmul.f32.gmra.mxu0 %v2048
    %v2076 = vpop.f32.mrf.mxu0
    %v2077 = vadd.f32 0.0, %v2076
    %2078 = vmatmul.f32.gmra.mxu0 %v2051
    %v2079 = vpop.f32.mrf.mxu0
    %v2080 = vadd.f32 0.0, %v2079
    %2081 = vmatmul.f32.gmra.mxu0 %v2054
    %v2082 = vpop.f32.mrf.mxu0
    %v2083 = vadd.f32 0.0, %v2082
    %2084 = vdwg.mxu0
    %2085 = vmatpush.msra.mxu0 0.0
    %2086 = vmatpush.msra.mxu0 0.0
    %2087 = vmatpush.msra.mxu0 0.0
    %2088 = vmatpush.msra.mxu0 0.0
    %2089 = vmatpush.msra.mxu0 0.0
    %2090 = vmatpush.msra.mxu0 0.0
    %2091 = vmatpush.msra.mxu0 0.0
    %2092 = vmatpush.msra.mxu0 0.0
    %2093 = vmatpush.msra.mxu0 %v2041
    %2094 = vmatpush.msra.mxu0 %v2037
    %2095 = vmatpush.msra.mxu0 %v2033
    %2096 = vmatpush.msra.mxu0 %v2029
    %2097 = vmatpush.msra.mxu0 %v2025
    %2098 = vmatpush.msra.mxu0 %v2021
    %2099 = vmatpush.msra.mxu0 %v2017
    %2100 = vmatpush.msra.mxu0 %v2013
    %2101 = vmatmul.f32.gmra.mxu0 %v2045
    %v2102 = vpop.f32.mrf.mxu0
    %v2103 = vadd.f32 0.0, %v2102
    %2104 = vmatmul.f32.gmra.mxu0 %v2048
    %v2105 = vpop.f32.mrf.mxu0
    %v2106 = vadd.f32 0.0, %v2105
    %2107 = vmatmul.f32.gmra.mxu0 %v2051
    %v2108 = vpop.f32.mrf.mxu0
    %v2109 = vadd.f32 0.0, %v2108
    %2110 = vmatmul.f32.gmra.mxu0 %v2054
    %v2111 = vpop.f32.mrf.mxu0
    %v2112 = vadd.f32 0.0, %v2111
    %2113 = vdwg.mxu0
    %2114 = vmatpush.msra.mxu0 0.0
    %2115 = vmatpush.msra.mxu0 0.0
    %2116 = vmatpush.msra.mxu0 0.0
    %2117 = vmatpush.msra.mxu0 0.0
    %2118 = vmatpush.msra.mxu0 0.0
    %2119 = vmatpush.msra.mxu0 0.0
    %2120 = vmatpush.msra.mxu0 0.0
    %2121 = vmatpush.msra.mxu0 0.0
    %2122 = vmatpush.msra.mxu0 %v2042
    %2123 = vmatpush.msra.mxu0 %v2038
    %2124 = vmatpush.msra.mxu0 %v2034
    %2125 = vmatpush.msra.mxu0 %v2030
    %2126 = vmatpush.msra.mxu0 %v2026
    %2127 = vmatpush.msra.mxu0 %v2022
    %2128 = vmatpush.msra.mxu0 %v2018
    %2129 = vmatpush.msra.mxu0 %v2014
    %2130 = vmatmul.f32.gmra.mxu0 %v2045
    %v2131 = vpop.f32.mrf.mxu0
    %v2132 = vadd.f32 0.0, %v2131
    %2133 = vmatmul.f32.gmra.mxu0 %v2048
    %v2134 = vpop.f32.mrf.mxu0
    %v2135 = vadd.f32 0.0, %v2134
    %2136 = vmatmul.f32.gmra.mxu0 %v2051
    %v2137 = vpop.f32.mrf.mxu0
    %v2138 = vadd.f32 0.0, %v2137
    %2139 = vmatmul.f32.gmra.mxu0 %v2054
    %v2140 = vpop.f32.mrf.mxu0
    %v2141 = vadd.f32 0.0, %v2140
    %2142 = vdwg.mxu0
    %2143 = vmatpush.msra.mxu0 0.0
    %2144 = vmatpush.msra.mxu0 0.0
    %2145 = vmatpush.msra.mxu0 0.0
    %2146 = vmatpush.msra.mxu0 0.0
    %2147 = vmatpush.msra.mxu0 0.0
    %2148 = vmatpush.msra.mxu0 0.0
    %2149 = vmatpush.msra.mxu0 0.0
    %2150 = vmatpush.msra.mxu0 0.0
    %2151 = vmatpush.msra.mxu0 %v2043
    %2152 = vmatpush.msra.mxu0 %v2039
    %2153 = vmatpush.msra.mxu0 %v2035
    %2154 = vmatpush.msra.mxu0 %v2031
    %2155 = vmatpush.msra.mxu0 %v2027
    %2156 = vmatpush.msra.mxu0 %v2023
    %2157 = vmatpush.msra.mxu0 %v2019
    %2158 = vmatpush.msra.mxu0 %v2015
    %2159 = vmatmul.f32.gmra.mxu0 %v2045
    %v2160 = vpop.f32.mrf.mxu0
    %v2161 = vadd.f32 0.0, %v2160
    %2162 = vmatmul.f32.gmra.mxu0 %v2048
    %v2163 = vpop.f32.mrf.mxu0
    %v2164 = vadd.f32 0.0, %v2163
    %2165 = vmatmul.f32.gmra.mxu0 %v2051
    %v2166 = vpop.f32.mrf.mxu0
    %v2167 = vadd.f32 0.0, %v2166
    %2168 = vmatmul.f32.gmra.mxu0 %v2054
    %v2169 = vpop.f32.mrf.mxu0
    %v2170 = vadd.f32 0.0, %v2169
    %2171 = vdwg.mxu0
    %v2172 = vadd.f32 %v1455, %v2074
    %v2173 = vadd.f32 %v1629, %v2103
    %v2174 = vadd.f32 %v1827, %v2132
    %v2175 = vadd.f32 %v2001, %v2161
    %v2176 = vadd.f32 %v1458, %v2077
    %v2177 = vadd.f32 %v1632, %v2106
    %v2178 = vadd.f32 %v1830, %v2135
    %v2179 = vadd.f32 %v2004, %v2164
    %v2180 = vadd.f32 %v1461, %v2080
    %v2181 = vadd.f32 %v1635, %v2109
    %v2182 = vadd.f32 %v1833, %v2138
    %v2183 = vadd.f32 %v2007, %v2167
    %v2184 = vadd.f32 %v1464, %v2083
    %v2185 = vadd.f32 %v1638, %v2112
    %v2186 = vadd.f32 %v1836, %v2141
    %v2187 = vadd.f32 %v2010, %v2170
    %v2188 = vld [vmem:[%s10] sm:$0xf]
    %v2190 = vperm.slane %v2188, 0
    %v2191 = vperm.slane %v2188, 1
    %v2192 = vperm.slane %v2188, 2
    %v2193 = vperm.slane %v2188, 3
    %v2198 = vadd.f32 %v2172, %v2190
    %v2199 = vadd.f32 %v2173, %v2191
    %v2200 = vadd.f32 %v2174, %v2192
    %v2201 = vadd.f32 %v2175, %v2193
    %v2202 = vadd.f32 %v2176, %v2190
    %v2203 = vadd.f32 %v2177, %v2191
    %v2204 = vadd.f32 %v2178, %v2192
    %v2205 = vadd.f32 %v2179, %v2193
    %v2206 = vadd.f32 %v2180, %v2190
    %v2207 = vadd.f32 %v2181, %v2191
    %v2208 = vadd.f32 %v2182, %v2192
    %v2209 = vadd.f32 %v2183, %v2193
    %v2210 = vadd.f32 %v2184, %v2190
    %v2211 = vadd.f32 %v2185, %v2191
    %v2212 = vadd.f32 %v2186, %v2192
    %v2213 = vadd.f32 %v2187, %v2193
    %2214 = vst [vmem:[%s11] sm:$0xff] %v2198
    %2215 = vst [vmem:[%s11 + $0x8] sm:$0xff] %v2199
    %2216 = vst [vmem:[%s11 + $0x10] sm:$0xff] %v2200
    %2217 = vst [vmem:[%s11 + $0x18] sm:$0xff] %v2201
    %2218 = vst [vmem:[%s11 + $0x20] sm:$0xff] %v2202
    %2219 = vst [vmem:[%s11 + $0x28] sm:$0xff] %v2203
    %2220 = vst [vmem:[%s11 + $0x30] sm:$0xff] %v2204
    %2221 = vst [vmem:[%s11 + $0x38] sm:$0xff] %v2205
    %2222 = vst [vmem:[%s11 + $0x40] sm:$0xff] %v2206
    %2223 = vst [vmem:[%s11 + $0x48] sm:$0xff] %v2207
    %2224 = vst [vmem:[%s11 + $0x50] sm:$0xff] %v2208
    %2225 = vst [vmem:[%s11 + $0x58] sm:$0xff] %v2209
    %2226 = vst [vmem:[%s11 + $0x60] sm:$0xff] %v2210
    %2227 = vst [vmem:[%s11 + $0x68] sm:$0xff] %v2211
    %2228 = vst [vmem:[%s11 + $0x70] sm:$0xff] %v2212
    %2229 = vst [vmem:[%s11 + $0x78] sm:$0xff] %v2213
    // Predicated region
    $region50: #{residual_block_up_forward.1} parent=1 // pred_check
      _
    $region51: #{residual_block_up_forward.1} parent=1 // pred_check_branch
      %2231 = sbr.rel (0) target = $region53
    $region52: #{residual_block_up_forward.1} parent=1 // pred_region
      _
    $region53: #{residual_block_up_forward.1} parent=1 // pred_fallthru
      _
    // Predicated region
    $region54: #{residual_block_up_forward.1} parent=1 // pred_check
      _
    $region55: #{residual_block_up_forward.1} parent=1 // pred_check_branch
      %2233 = sbr.rel (0) target = $region57
    $region56: #{residual_block_up_forward.1} parent=1 // pred_region
      _
    $region57: #{residual_block_up_forward.1} parent=1 // pred_fallthru
      _
    %2234 = vsyncpa [#allocation3], 1

</llo_original>
